<compile_context>
chip_gen: v6e
topology: v6e:2x2x1
jax: 0.10.0
libtpu: 0.0.40
codegen_flags: <defaults>
</compile_context>

<pallas_src>
import jax
import jax.numpy as jnp
from jax import lax
from jax.experimental import pallas as pl
from jax.experimental.pallas import tpu as pltpu


def _round_up(x, m):
    return (x + m - 1) // m * m


# ----------------------------------------------------------------------------
# Kernel 1: fused 3x3 conv (9 shifted matmuls, bf16 in / f32 acc) + BN batch-stat accumulation
#   grid = (MC, KT, Hc):  MC = H split (megacore, "parallel"), KT = output-channel tiles
#   ("parallel"), Hc = output rows per split ("arbitrary", stats reduction axis).
#   Per step: all N images, one output row, one channel tile  ->  M = N*W matmul rows.
# ----------------------------------------------------------------------------
def conv_stats_kernel(x0_ref, x1_ref, x2_ref, w_ref, y_ref, stats_ref, acc_ref):
    h = pl.program_id(2)
    n, w_out, tn = y_ref.shape          # (N, W, tn)
    c = x0_ref.shape[-1]                # input channels

    @pl.when(h == 0)
    def _init():
        acc_ref[...] = jnp.zeros_like(acc_ref)

    y = jnp.zeros((n * w_out, tn), dtype=jnp.float32)
    for dh, x_ref in enumerate((x0_ref, x1_ref, x2_ref)):
        row = x_ref[...]                                    # (N, W+2, C) bf16
        for dw in range(3):
            lhs = row[:, dw:dw + w_out, :].reshape(n * w_out, c)        # bf16
            y = y + jnp.dot(lhs, w_ref[dh, dw],
                            preferred_element_type=jnp.float32)

    y_ref[...] = y.reshape(n, w_out, tn)

    # per-channel sum / sum-of-squares, accumulated in VMEM, flushed once at the end
    acc_ref[...] += jnp.concatenate(
        [jnp.sum(y, axis=0, keepdims=True),
         jnp.sum(y * y, axis=0, keepdims=True)], axis=0)

    @pl.when(h == pl.num_programs(2) - 1)
    def _flush():
        stats_ref[...] = acc_ref[...]


# ----------------------------------------------------------------------------
# Kernel 2: folded BatchNorm affine (scale, bias) + LeakyReLU(0.1), in-place over y
# ----------------------------------------------------------------------------
def bn_lrelu_kernel(y_ref, scale_ref, bias_ref, o_ref):
    y = y_ref[...] * scale_ref[...] + bias_ref[...]
    o_ref[...] = jnp.where(y >= 0.0, y, 0.1 * y)


def conv_block_forward(x, weight, gamma, beta, *, eps=1e-5, tn=128, ew_rows=512):
    """x: (N, C, H, W) f32; weight: (K, C, 3, 3); gamma/beta: (K,).  Returns (N, K, H, W) f32."""
    N, C, H, W = x.shape
    K = weight.shape[0]
    kh, kw = weight.shape[2], weight.shape[3]
    assert (kh, kw) == (3, 3), "this conv_block kernel implements the 3x3 / stride 1 / pad 1 path"

    Kp = _round_up(K, 128)              # lane-dense output channels
    tn = min(tn, Kp)
    KT = Kp // tn
    Wp2 = W + 2
    M = N * H * W

    # NCHW -> NHWC, zero-pad spatially by 1, bf16 MXU inputs (f32 accumulation in-kernel).
    x_nhwc = jnp.transpose(x, (0, 2, 3, 1)).astype(jnp.bfloat16)
    x_pad = jnp.pad(x_nhwc, ((0, 0), (1, 1), (1, 1), (0, 0)))            # (N, H+2, W+2, C)

    # weight (K, C, 3, 3) -> (3, 3, C, Kp) bf16, zero-padded output channels.
    w_t = jnp.transpose(weight, (2, 3, 1, 0)).astype(jnp.bfloat16)       # (3, 3, C, K)
    w_t = jnp.pad(w_t, ((0, 0), (0, 0), (0, 0), (0, Kp - K)))

    # Megacore split of H (v7x: 2 TensorCores); per-split partial BN stats, summed in glue.
    MC = 2 if H % 2 == 0 else 1
    Hc = H // MC

    def x_spec(dh):
        return pl.BlockSpec(
            (N, None, Wp2, C),
            lambda mc, kt, h, dh=dh: (0, mc * Hc + h + dh, 0, 0))

    w_spec = pl.BlockSpec((kh, kw, C, tn), lambda mc, kt, h: (0, 0, 0, kt))
    y_spec = pl.BlockSpec((N, None, W, tn), lambda mc, kt, h: (0, mc * Hc + h, 0, kt))
    stats_spec = pl.BlockSpec((None, 2, tn), lambda mc, kt, h: (mc, 0, kt))

    flops = 2 * M * (kh * kw * C) * Kp
    bytes_accessed = (3 * KT * x_pad.size * 2 + w_t.size * 2
                      + M * Kp * 4 + MC * 2 * Kp * 4)

    y_nhwc, stats = pl.pallas_call(
        conv_stats_kernel,
        out_shape=(
            jax.ShapeDtypeStruct((N, H, W, Kp), jnp.float32),
            jax.ShapeDtypeStruct((MC, 2, Kp), jnp.float32),
        ),
        grid_spec=pltpu.PrefetchScalarGridSpec(
            num_scalar_prefetch=0,
            grid=(MC, KT, Hc),
            in_specs=[x_spec(0), x_spec(1), x_spec(2), w_spec],
            out_specs=[y_spec, stats_spec],
            scratch_shapes=[pltpu.VMEM((2, tn), jnp.float32)],
        ),
        compiler_params=pltpu.CompilerParams(
            dimension_semantics=("parallel", "parallel", "arbitrary"),
            vmem_limit_bytes=48 * 1024 * 1024,
        ),
        cost_estimate=pl.CostEstimate(
            flops=flops, transcendentals=0, bytes_accessed=bytes_accessed),
    )(x_pad, x_pad, x_pad, w_t)

    # Fold training-mode BatchNorm (biased variance) into per-channel scale / bias (f32 glue).
    gamma_p = jnp.pad(gamma.astype(jnp.float32), (0, Kp - K), constant_values=1.0)
    beta_p = jnp.pad(beta.astype(jnp.float32), (0, Kp - K))
    ch_sum = jnp.sum(stats[:, 0, :], axis=0)
    ch_ssq = jnp.sum(stats[:, 1, :], axis=0)
    mean = ch_sum / M
    var = jnp.maximum(ch_ssq / M - mean * mean, 0.0)     # clamp: E[y^2]-E[y]^2 cancellation guard
    inv_std = lax.rsqrt(var + eps)
    scale = (gamma_p * inv_std).reshape(1, Kp)
    bias = (beta_p - mean * gamma_p * inv_std).reshape(1, Kp)

    # Kernel 2: lane-dense (rows, Kp) tiles, written in place over the conv output.
    y_flat = y_nhwc.reshape(M, Kp)
    tm2 = next((c2 for c2 in (1024, 512, 256, 128, 64, 32, 16, 8) if M % c2 == 0), M)

    out_flat = pl.pallas_call(
        bn_lrelu_kernel,
        out_shape=jax.ShapeDtypeStruct((M, Kp), jnp.float32),
        grid_spec=pltpu.PrefetchScalarGridSpec(
            num_scalar_prefetch=0,
            grid=(M // tm2,),
            in_specs=[
                pl.BlockSpec((tm2, Kp), lambda i: (i, 0)),
                pl.BlockSpec((1, Kp), lambda i: (0, 0)),
                pl.BlockSpec((1, Kp), lambda i: (0, 0)),
            ],
            out_specs=pl.BlockSpec((tm2, Kp), lambda i: (i, 0)),
        ),
        compiler_params=pltpu.CompilerParams(
            dimension_semantics=("parallel",),
            vmem_limit_bytes=48 * 1024 * 1024,
        ),
        input_output_aliases={0: 0},
    )(y_flat, scale, bias)

    # Back to NCHW (PyTorch layout).
    # TODO(synk): when K % 128 == 0 (most production YOLO layers) fold this transpose into
    # kernel 2's out_spec (write NCHW tiles directly) to save one XLA HBM pass.
    out = out_flat[:, :K].reshape(N, H, W, K)
    return jnp.transpose(out, (0, 3, 1, 2))


# ----------------------------------------------------------------------------
# Pure-JAX reference (mirrors PyTorch forward in training mode; conv inputs quantized to bf16
# to match the MXU input precision used by the kernel — BN/LeakyReLU math stays f32).
# ----------------------------------------------------------------------------
def conv_block_reference(x, weight, gamma, beta, *, eps=1e-5, mxu_bf16=True):
    if mxu_bf16:
        x = x.astype(jnp.bfloat16).astype(jnp.float32)
        weight = weight.astype(jnp.bfloat16).astype(jnp.float32)
    y = lax.conv_general_dilated(
        x, weight, window_strides=(1, 1), padding=((1, 1), (1, 1)),
        dimension_numbers=("NCHW", "OIHW", "NCHW"),
    )
    mean = jnp.mean(y, axis=(0, 2, 3), keepdims=True)
    var = jnp.mean((y - mean) ** 2, axis=(0, 2, 3), keepdims=True)   # biased, like BN training
    y = (y - mean) / jnp.sqrt(var + eps)
    y = y * gamma.reshape(1, -1, 1, 1) + beta.reshape(1, -1, 1, 1)
    return jnp.where(y >= 0.0, y, 0.1 * y)


if __name__ == "__main__":
    key = jax.random.PRNGKey(0)
    k_x, k_w, k_g, k_b = jax.random.split(key, 4)

    # Small shapes consistent with a YOLOv1 conv_block: kernel_size=3, stride=1, padding=1.
    N, C, H, W = 2, 4, 16, 16
    K_out = 8

    x = jax.random.normal(k_x, (N, C, H, W), dtype=jnp.float32)
    weight = jax.random.normal(k_w, (K_out, C, 3, 3), dtype=jnp.float32) * 0.1
    gamma = 1.0 + 0.1 * jax.random.normal(k_g, (K_out,), dtype=jnp.float32)
    beta = 0.1 * jax.random.normal(k_b, (K_out,), dtype=jnp.float32)

    out = jax.jit(conv_block_forward)(x, weight, gamma, beta)
    out = jax.block_until_ready(out)

    ref = conv_block_reference(x, weight, gamma, beta)
    assert out.shape == (N, K_out, H, W)
    max_err = jnp.max(jnp.abs(out - ref))
    assert jnp.allclose(out, ref, atol=2e-3, rtol=2e-3), f"mismatch vs reference (max |err|={max_err})"

    print("KERNEL_OK")
</pallas_src>

<mosaic_0001>
module attributes {stable_mosaic.version = 11 : i64} {
  func.func @bn_lrelu_kernel(%arg0: i32, %arg1: memref<512x128xf32, #tpu.memory_space<vmem>>, %arg2: memref<1x128xf32, #tpu.memory_space<vmem>>, %arg3: memref<1x128xf32, #tpu.memory_space<vmem>>, %arg4: memref<512x128xf32, #tpu.memory_space<vmem>>) attributes {dimension_semantics = [#tpu.dimension_semantics<parallel>], iteration_bounds = array<i64: 1>, scalar_prefetch = 0 : i64, scratch_operands = 0 : i64, tpu.core_type = #tpu.core_type<tc>, window_params = [{transform_indices = @transform_0, window_bounds = array<i64: 512, 128>}, {pipeline_mode = #tpu.pipeline_mode<synchronous>, transform_indices = @transform_1, window_bounds = array<i64: 1, 128>}, {pipeline_mode = #tpu.pipeline_mode<synchronous>, transform_indices = @transform_2, window_bounds = array<i64: 1, 128>}, {transform_indices = @transform_3, window_bounds = array<i64: 512, 128>}]} {
    %c0 = arith.constant 0 : index
    %c0_0 = arith.constant 0 : index
    %0 = vector.load %arg1[%c0, %c0_0] : memref<512x128xf32, #tpu.memory_space<vmem>>, vector<512x128xf32>
    %c0_1 = arith.constant 0 : index
    %c0_2 = arith.constant 0 : index
    %1 = vector.load %arg2[%c0_1, %c0_2] : memref<1x128xf32, #tpu.memory_space<vmem>>, vector<1x128xf32>
    %2 = vector.broadcast %1 : vector<1x128xf32> to vector<512x128xf32>
    %3 = arith.mulf %0, %2 : vector<512x128xf32>
    %c0_3 = arith.constant 0 : index
    %c0_4 = arith.constant 0 : index
    %4 = vector.load %arg3[%c0_3, %c0_4] : memref<1x128xf32, #tpu.memory_space<vmem>>, vector<1x128xf32>
    %5 = vector.broadcast %4 : vector<1x128xf32> to vector<512x128xf32>
    %6 = arith.addf %3, %5 : vector<512x128xf32>
    %cst = arith.constant 0.000000e+00 : f32
    %7 = vector.broadcast %cst : f32 to vector<512x128xf32>
    %8 = arith.cmpf oge, %6, %7 : vector<512x128xf32>
    %cst_5 = arith.constant 1.000000e-01 : f32
    %9 = vector.broadcast %cst_5 : f32 to vector<512x128xf32>
    %10 = arith.mulf %9, %6 : vector<512x128xf32>
    %11 = arith.select %8, %6, %10 : vector<512x128xi1>, vector<512x128xf32>
    %c0_6 = arith.constant 0 : index
    %c0_7 = arith.constant 0 : index
    %12 = vector.load %arg4[%c0_6, %c0_7] : memref<512x128xf32, #tpu.memory_space<vmem>>, vector<512x128xf32>
    tpu.vector_store %arg4[%c0_6, %c0_7], %11 {strides = array<i32>} : memref<512x128xf32, #tpu.memory_space<vmem>>, vector<512x128xf32>,
    return
  }
  func.func @transform_0(%arg0: i32) -> (i32, i32) {
    %c0_i32 = arith.constant 0 : i32
    %c0_i32_0 = arith.constant 0 : i32
    return %arg0, %c0_i32 : i32, i32
  }
  func.func @transform_1(%arg0: i32) -> (i32, i32) {
    %c0_i32 = arith.constant 0 : i32
    %c0_i32_0 = arith.constant 0 : i32
    %c0_i32_1 = arith.constant 0 : i32
    return %c0_i32, %c0_i32_0 : i32, i32
  }
  func.func @transform_2(%arg0: i32) -> (i32, i32) {
    %c0_i32 = arith.constant 0 : i32
    %c0_i32_0 = arith.constant 0 : i32
    %c0_i32_1 = arith.constant 0 : i32
    return %c0_i32, %c0_i32_0 : i32, i32
  }
  func.func @transform_3(%arg0: i32) -> (i32, i32) {
    %c0_i32 = arith.constant 0 : i32
    %c0_i32_0 = arith.constant 0 : i32
    return %arg0, %c0_i32 : i32, i32
  }
}

module attributes {stable_mosaic.version = 11 : i64} {
  func.func @conv_stats_kernel(%arg0: i32, %arg1: i32, %arg2: i32, %arg3: memref<2x1x18x4xbf16, #tpu.memory_space<vmem>>, %arg4: memref<2x1x18x4xbf16, #tpu.memory_space<vmem>>, %arg5: memref<2x1x18x4xbf16, #tpu.memory_space<vmem>>, %arg6: memref<3x3x4x128xbf16, #tpu.memory_space<vmem>>, %arg7: memref<2x1x16x128xf32, #tpu.memory_space<vmem>>, %arg8: memref<1x2x128xf32, #tpu.memory_space<vmem>>, %arg9: memref<2x128xf32, #tpu.memory_space<vmem>>) attributes {dimension_semantics = [#tpu.dimension_semantics<parallel>, #tpu.dimension_semantics<parallel>, #tpu.dimension_semantics<arbitrary>], iteration_bounds = array<i64: 2, 1, 8>, scalar_prefetch = 0 : i64, scratch_operands = 1 : i64, tpu.core_type = #tpu.core_type<tc>, window_params = [{transform_indices = @transform_0, window_bounds = array<i64: 2, 1, 18, 4>}, {transform_indices = @transform_1, window_bounds = array<i64: 2, 1, 18, 4>}, {transform_indices = @transform_2, window_bounds = array<i64: 2, 1, 18, 4>}, {transform_indices = @transform_3, window_bounds = array<i64: 3, 3, 4, 128>}, {transform_indices = @transform_4, window_bounds = array<i64: 2, 1, 16, 128>}, {transform_indices = @transform_5, window_bounds = array<i64: 1, 2, 128>}]} {
    %c0_i32 = arith.constant 0 : i32
    %0 = arith.cmpi eq, %arg2, %c0_i32 : i32
    %1 = arith.extui %0 : i1 to i32
    %c0_i32_0 = arith.constant 0 : i32
    %2 = arith.cmpi ne, %1, %c0_i32_0 : i32
    scf.if %2 {
      %cst_66 = arith.constant 0.000000e+00 : f32
      %80 = vector.broadcast %cst_66 : f32 to vector<2x128xf32>
      %c0_67 = arith.constant 0 : index
      %c0_68 = arith.constant 0 : index
      %81 = vector.load %arg9[%c0_67, %c0_68] : memref<2x128xf32, #tpu.memory_space<vmem>>, vector<2x128xf32>
      tpu.vector_store %arg9[%c0_67, %c0_68], %80 {strides = array<i32>} : memref<2x128xf32, #tpu.memory_space<vmem>>, vector<2x128xf32>,
    } else {
    }
    %cst = arith.constant 0.000000e+00 : f32
    %3 = vector.broadcast %cst : f32 to vector<32x128xf32>
    %c0 = arith.constant 0 : index
    %c0_1 = arith.constant 0 : index
    %c0_2 = arith.constant 0 : index
    %c0_3 = arith.constant 0 : index
    %4 = vector.load %arg3[%c0, %c0_1, %c0_2, %c0_3] : memref<2x1x18x4xbf16, #tpu.memory_space<vmem>>, vector<2x1x18x4xbf16>
    %5 = vector.shape_cast %4 : vector<2x1x18x4xbf16> to vector<2x18x4xbf16>
    %6 = vector.extract_strided_slice %5 {offsets = [0, 0, 0], sizes = [2, 16, 4], strides = [1, 1, 1]} : vector<2x18x4xbf16> to vector<2x16x4xbf16>
    %7 = vector.shape_cast %6 : vector<2x16x4xbf16> to vector<32x4xbf16>
    %c0_4 = arith.constant 0 : index
    %c0_5 = arith.constant 0 : index
    %c0_6 = arith.constant 0 : index
    %c0_7 = arith.constant 0 : index
    %8 = vector.load %arg6[%c0_4, %c0_5, %c0_6, %c0_7] : memref<3x3x4x128xbf16, #tpu.memory_space<vmem>>, vector<1x1x4x128xbf16>
    %9 = vector.shape_cast %8 : vector<1x1x4x128xbf16> to vector<4x128xbf16>
    %cst_8 = arith.constant dense<0.000000e+00> : vector<32x128xf32>
    %10 = tpu.matmul %7, %9, %cst_8 {dimension_numbers = #tpu.dot_dimension_numbers<[1], [0], [0], [1], [0, 0, 1, 1], [], []>} : vector<32x4xbf16>, vector<4x128xbf16>, vector<32x128xf32> -> vector<32x128xf32>
    %11 = arith.addf %3, %10 : vector<32x128xf32>
    %12 = vector.extract_strided_slice %5 {offsets = [0, 1, 0], sizes = [2, 16, 4], strides = [1, 1, 1]} : vector<2x18x4xbf16> to vector<2x16x4xbf16>
    %13 = vector.shape_cast %12 : vector<2x16x4xbf16> to vector<32x4xbf16>
    %c0_9 = arith.constant 0 : index
    %c1 = arith.constant 1 : index
    %c0_10 = arith.constant 0 : index
    %c0_11 = arith.constant 0 : index
    %14 = vector.load %arg6[%c0_9, %c1, %c0_10, %c0_11] : memref<3x3x4x128xbf16, #tpu.memory_space<vmem>>, vector<1x1x4x128xbf16>
    %15 = vector.shape_cast %14 : vector<1x1x4x128xbf16> to vector<4x128xbf16>
    %cst_12 = arith.constant dense<0.000000e+00> : vector<32x128xf32>
    %16 = tpu.matmul %13, %15, %cst_12 {dimension_numbers = #tpu.dot_dimension_numbers<[1], [0], [0], [1], [0, 0, 1, 1], [], []>} : vector<32x4xbf16>, vector<4x128xbf16>, vector<32x128xf32> -> vector<32x128xf32>
    %17 = arith.addf %11, %16 : vector<32x128xf32>
    %18 = vector.extract_strided_slice %5 {offsets = [0, 2, 0], sizes = [2, 16, 4], strides = [1, 1, 1]} : vector<2x18x4xbf16> to vector<2x16x4xbf16>
    %19 = vector.shape_cast %18 : vector<2x16x4xbf16> to vector<32x4xbf16>
    %c0_13 = arith.constant 0 : index
    %c2 = arith.constant 2 : index
    %c0_14 = arith.constant 0 : index
    %c0_15 = arith.constant 0 : index
    %20 = vector.load %arg6[%c0_13, %c2, %c0_14, %c0_15] : memref<3x3x4x128xbf16, #tpu.memory_space<vmem>>, vector<1x1x4x128xbf16>
    %21 = vector.shape_cast %20 : vector<1x1x4x128xbf16> to vector<4x128xbf16>
    %cst_16 = arith.constant dense<0.000000e+00> : vector<32x128xf32>
    %22 = tpu.matmul %19, %21, %cst_16 {dimension_numbers = #tpu.dot_dimension_numbers<[1], [0], [0], [1], [0, 0, 1, 1], [], []>} : vector<32x4xbf16>, vector<4x128xbf16>, vector<32x128xf32> -> vector<32x128xf32>
    %23 = arith.addf %17, %22 : vector<32x128xf32>
    %c0_17 = arith.constant 0 : index
    %c0_18 = arith.constant 0 : index
    %c0_19 = arith.constant 0 : index
    %c0_20 = arith.constant 0 : index
    %24 = vector.load %arg4[%c0_17, %c0_18, %c0_19, %c0_20] : memref<2x1x18x4xbf16, #tpu.memory_space<vmem>>, vector<2x1x18x4xbf16>
    %25 = vector.shape_cast %24 : vector<2x1x18x4xbf16> to vector<2x18x4xbf16>
    %26 = vector.extract_strided_slice %25 {offsets = [0, 0, 0], sizes = [2, 16, 4], strides = [1, 1, 1]} : vector<2x18x4xbf16> to vector<2x16x4xbf16>
    %27 = vector.shape_cast %26 : vector<2x16x4xbf16> to vector<32x4xbf16>
    %c1_21 = arith.constant 1 : index
    %c0_22 = arith.constant 0 : index
    %c0_23 = arith.constant 0 : index
    %c0_24 = arith.constant 0 : index
    %28 = vector.load %arg6[%c1_21, %c0_22, %c0_23, %c0_24] : memref<3x3x4x128xbf16, #tpu.memory_space<vmem>>, vector<1x1x4x128xbf16>
    %29 = vector.shape_cast %28 : vector<1x1x4x128xbf16> to vector<4x128xbf16>
    %cst_25 = arith.constant dense<0.000000e+00> : vector<32x128xf32>
    %30 = tpu.matmul %27, %29, %cst_25 {dimension_numbers = #tpu.dot_dimension_numbers<[1], [0], [0], [1], [0, 0, 1, 1], [], []>} : vector<32x4xbf16>, vector<4x128xbf16>, vector<32x128xf32> -> vector<32x128xf32>
    %31 = arith.addf %23, %30 : vector<32x128xf32>
    %32 = vector.extract_strided_slice %25 {offsets = [0, 1, 0], sizes = [2, 16, 4], strides = [1, 1, 1]} : vector<2x18x4xbf16> to vector<2x16x4xbf16>
    %33 = vector.shape_cast %32 : vector<2x16x4xbf16> to vector<32x4xbf16>
    %c1_26 = arith.constant 1 : index
    %c1_27 = arith.constant 1 : index
    %c0_28 = arith.constant 0 : index
    %c0_29 = arith.constant 0 : index
    %34 = vector.load %arg6[%c1_26, %c1_27, %c0_28, %c0_29] : memref<3x3x4x128xbf16, #tpu.memory_space<vmem>>, vector<1x1x4x128xbf16>
    %35 = vector.shape_cast %34 : vector<1x1x4x128xbf16> to vector<4x128xbf16>
    %cst_30 = arith.constant dense<0.000000e+00> : vector<32x128xf32>
    %36 = tpu.matmul %33, %35, %cst_30 {dimension_numbers = #tpu.dot_dimension_numbers<[1], [0], [0], [1], [0, 0, 1, 1], [], []>} : vector<32x4xbf16>, vector<4x128xbf16>, vector<32x128xf32> -> vector<32x128xf32>
    %37 = arith.addf %31, %36 : vector<32x128xf32>
    %38 = vector.extract_strided_slice %25 {offsets = [0, 2, 0], sizes = [2, 16, 4], strides = [1, 1, 1]} : vector<2x18x4xbf16> to vector<2x16x4xbf16>
    %39 = vector.shape_cast %38 : vector<2x16x4xbf16> to vector<32x4xbf16>
    %c1_31 = arith.constant 1 : index
    %c2_32 = arith.constant 2 : index
    %c0_33 = arith.constant 0 : index
    %c0_34 = arith.constant 0 : index
    %40 = vector.load %arg6[%c1_31, %c2_32, %c0_33, %c0_34] : memref<3x3x4x128xbf16, #tpu.memory_space<vmem>>, vector<1x1x4x128xbf16>
    %41 = vector.shape_cast %40 : vector<1x1x4x128xbf16> to vector<4x128xbf16>
    %cst_35 = arith.constant dense<0.000000e+00> : vector<32x128xf32>
    %42 = tpu.matmul %39, %41, %cst_35 {dimension_numbers = #tpu.dot_dimension_numbers<[1], [0], [0], [1], [0, 0, 1, 1], [], []>} : vector<32x4xbf16>, vector<4x128xbf16>, vector<32x128xf32> -> vector<32x128xf32>
    %43 = arith.addf %37, %42 : vector<32x128xf32>
    %c0_36 = arith.constant 0 : index
    %c0_37 = arith.constant 0 : index
    %c0_38 = arith.constant 0 : index
    %c0_39 = arith.constant 0 : index
    %44 = vector.load %arg5[%c0_36, %c0_37, %c0_38, %c0_39] : memref<2x1x18x4xbf16, #tpu.memory_space<vmem>>, vector<2x1x18x4xbf16>
    %45 = vector.shape_cast %44 : vector<2x1x18x4xbf16> to vector<2x18x4xbf16>
    %46 = vector.extract_strided_slice %45 {offsets = [0, 0, 0], sizes = [2, 16, 4], strides = [1, 1, 1]} : vector<2x18x4xbf16> to vector<2x16x4xbf16>
    %47 = vector.shape_cast %46 : vector<2x16x4xbf16> to vector<32x4xbf16>
    %c2_40 = arith.constant 2 : index
    %c0_41 = arith.constant 0 : index
    %c0_42 = arith.constant 0 : index
    %c0_43 = arith.constant 0 : index
    %48 = vector.load %arg6[%c2_40, %c0_41, %c0_42, %c0_43] : memref<3x3x4x128xbf16, #tpu.memory_space<vmem>>, vector<1x1x4x128xbf16>
    %49 = vector.shape_cast %48 : vector<1x1x4x128xbf16> to vector<4x128xbf16>
    %cst_44 = arith.constant dense<0.000000e+00> : vector<32x128xf32>
    %50 = tpu.matmul %47, %49, %cst_44 {dimension_numbers = #tpu.dot_dimension_numbers<[1], [0], [0], [1], [0, 0, 1, 1], [], []>} : vector<32x4xbf16>, vector<4x128xbf16>, vector<32x128xf32> -> vector<32x128xf32>
    %51 = arith.addf %43, %50 : vector<32x128xf32>
    %52 = vector.extract_strided_slice %45 {offsets = [0, 1, 0], sizes = [2, 16, 4], strides = [1, 1, 1]} : vector<2x18x4xbf16> to vector<2x16x4xbf16>
    %53 = vector.shape_cast %52 : vector<2x16x4xbf16> to vector<32x4xbf16>
    %c2_45 = arith.constant 2 : index
    %c1_46 = arith.constant 1 : index
    %c0_47 = arith.constant 0 : index
    %c0_48 = arith.constant 0 : index
    %54 = vector.load %arg6[%c2_45, %c1_46, %c0_47, %c0_48] : memref<3x3x4x128xbf16, #tpu.memory_space<vmem>>, vector<1x1x4x128xbf16>
    %55 = vector.shape_cast %54 : vector<1x1x4x128xbf16> to vector<4x128xbf16>
    %cst_49 = arith.constant dense<0.000000e+00> : vector<32x128xf32>
    %56 = tpu.matmul %53, %55, %cst_49 {dimension_numbers = #tpu.dot_dimension_numbers<[1], [0], [0], [1], [0, 0, 1, 1], [], []>} : vector<32x4xbf16>, vector<4x128xbf16>, vector<32x128xf32> -> vector<32x128xf32>
    %57 = arith.addf %51, %56 : vector<32x128xf32>
    %58 = vector.extract_strided_slice %45 {offsets = [0, 2, 0], sizes = [2, 16, 4], strides = [1, 1, 1]} : vector<2x18x4xbf16> to vector<2x16x4xbf16>
    %59 = vector.shape_cast %58 : vector<2x16x4xbf16> to vector<32x4xbf16>
    %c2_50 = arith.constant 2 : index
    %c2_51 = arith.constant 2 : index
    %c0_52 = arith.constant 0 : index
    %c0_53 = arith.constant 0 : index
    %60 = vector.load %arg6[%c2_50, %c2_51, %c0_52, %c0_53] : memref<3x3x4x128xbf16, #tpu.memory_space<vmem>>, vector<1x1x4x128xbf16>
    %61 = vector.shape_cast %60 : vector<1x1x4x128xbf16> to vector<4x128xbf16>
    %cst_54 = arith.constant dense<0.000000e+00> : vector<32x128xf32>
    %62 = tpu.matmul %59, %61, %cst_54 {dimension_numbers = #tpu.dot_dimension_numbers<[1], [0], [0], [1], [0, 0, 1, 1], [], []>} : vector<32x4xbf16>, vector<4x128xbf16>, vector<32x128xf32> -> vector<32x128xf32>
    %63 = arith.addf %57, %62 : vector<32x128xf32>
    %64 = vector.shape_cast %63 : vector<32x128xf32> to vector<2x16x128xf32>
    %c0_55 = arith.constant 0 : index
    %c0_56 = arith.constant 0 : index
    %c0_57 = arith.constant 0 : index
    %c0_58 = arith.constant 0 : index
    %65 = vector.load %arg7[%c0_55, %c0_56, %c0_57, %c0_58] : memref<2x1x16x128xf32, #tpu.memory_space<vmem>>, vector<2x1x16x128xf32>
    %66 = vector.shape_cast %65 : vector<2x1x16x128xf32> to vector<2x16x128xf32>
    %67 = vector.shape_cast %64 : vector<2x16x128xf32> to vector<2x1x16x128xf32>
    tpu.vector_store %arg7[%c0_55, %c0_56, %c0_57, %c0_58], %67 {strides = array<i32>} : memref<2x1x16x128xf32, #tpu.memory_space<vmem>>, vector<2x1x16x128xf32>,
    %c0_59 = arith.constant 0 : index
    %c0_60 = arith.constant 0 : index
    %68 = vector.load %arg9[%c0_59, %c0_60] : memref<2x128xf32, #tpu.memory_space<vmem>>, vector<2x128xf32>
    %cst_61 = arith.constant dense<0.000000e+00> : vector<128xf32>
    %69 = vector.multi_reduction <add>, %63, %cst_61 [0] : vector<32x128xf32> to vector<128xf32>
    %70 = vector.shape_cast %69 : vector<128xf32> to vector<1x128xf32>
    %71 = arith.mulf %63, %63 : vector<32x128xf32>
    %cst_62 = arith.constant dense<0.000000e+00> : vector<128xf32>
    %72 = vector.multi_reduction <add>, %71, %cst_62 [0] : vector<32x128xf32> to vector<128xf32>
    %73 = vector.shape_cast %72 : vector<128xf32> to vector<1x128xf32>
    %74 = tpu.concatenate %70, %73 in 0 : vector<1x128xf32>, vector<1x128xf32> -> vector<2x128xf32>
    %75 = arith.addf %68, %74 : vector<2x128xf32>
    %c0_63 = arith.constant 0 : index
    %c0_64 = arith.constant 0 : index
    %76 = vector.load %arg9[%c0_63, %c0_64] : memref<2x128xf32, #tpu.memory_space<vmem>>, vector<2x128xf32>
    tpu.vector_store %arg9[%c0_63, %c0_64], %75 {strides = array<i32>} : memref<2x128xf32, #tpu.memory_space<vmem>>, vector<2x128xf32>,
    %c7_i32 = arith.constant 7 : i32
    %77 = arith.cmpi eq, %arg2, %c7_i32 : i32
    %78 = arith.extui %77 : i1 to i32
    %c0_i32_65 = arith.constant 0 : i32
    %79 = arith.cmpi ne, %78, %c0_i32_65 : i32
    scf.if %79 {
      %c0_66 = arith.constant 0 : index
      %c0_67 = arith.constant 0 : index
      %80 = vector.load %arg9[%c0_66, %c0_67] : memref<2x128xf32, #tpu.memory_space<vmem>>, vector<2x128xf32>
      %c0_68 = arith.constant 0 : index
      %c0_69 = arith.constant 0 : index
      %c0_70 = arith.constant 0 : index
      %81 = vector.load %arg8[%c0_68, %c0_69, %c0_70] : memref<1x2x128xf32, #tpu.memory_space<vmem>>, vector<1x2x128xf32>
      %82 = vector.shape_cast %81 : vector<1x2x128xf32> to vector<2x128xf32>
      %83 = vector.shape_cast %80 : vector<2x128xf32> to vector<1x2x128xf32>
      tpu.vector_store %arg8[%c0_68, %c0_69, %c0_70], %83 {strides = array<i32>} : memref<1x2x128xf32, #tpu.memory_space<vmem>>, vector<1x2x128xf32>,
    } else {
    }
    return
  }
  func.func @transform_0(%arg0: i32, %arg1: i32, %arg2: i32) -> (i32, i32, i32, i32) {
    %c8_i32 = arith.constant 8 : i32
    %0 = arith.muli %arg0, %c8_i32 : i32
    %1 = arith.addi %0, %arg2 : i32
    %c0_i32 = arith.constant 0 : i32
    %2 = arith.addi %1, %c0_i32 : i32
    %c0_i32_0 = arith.constant 0 : i32
    %c0_i32_1 = arith.constant 0 : i32
    %c0_i32_2 = arith.constant 0 : i32
    %c0_i32_3 = arith.constant 0 : i32
    return %c0_i32_0, %2, %c0_i32_1, %c0_i32_2 : i32, i32, i32, i32
  }
  func.func @transform_1(%arg0: i32, %arg1: i32, %arg2: i32) -> (i32, i32, i32, i32) {
    %c8_i32 = arith.constant 8 : i32
    %0 = arith.muli %arg0, %c8_i32 : i32
    %1 = arith.addi %0, %arg2 : i32
    %c1_i32 = arith.constant 1 : i32
    %2 = arith.addi %1, %c1_i32 : i32
    %c0_i32 = arith.constant 0 : i32
    %c0_i32_0 = arith.constant 0 : i32
    %c0_i32_1 = arith.constant 0 : i32
    %c0_i32_2 = arith.constant 0 : i32
    return %c0_i32, %2, %c0_i32_0, %c0_i32_1 : i32, i32, i32, i32
  }
  func.func @transform_2(%arg0: i32, %arg1: i32, %arg2: i32) -> (i32, i32, i32, i32) {
    %c8_i32 = arith.constant 8 : i32
    %0 = arith.muli %arg0, %c8_i32 : i32
    %1 = arith.addi %0, %arg2 : i32
    %c2_i32 = arith.constant 2 : i32
    %2 = arith.addi %1, %c2_i32 : i32
    %c0_i32 = arith.constant 0 : i32
    %c0_i32_0 = arith.constant 0 : i32
    %c0_i32_1 = arith.constant 0 : i32
    %c0_i32_2 = arith.constant 0 : i32
    return %c0_i32, %2, %c0_i32_0, %c0_i32_1 : i32, i32, i32, i32
  }
  func.func @transform_3(%arg0: i32, %arg1: i32, %arg2: i32) -> (i32, i32, i32, i32) {
    %c0_i32 = arith.constant 0 : i32
    %c0_i32_0 = arith.constant 0 : i32
    %c0_i32_1 = arith.constant 0 : i32
    %c0_i32_2 = arith.constant 0 : i32
    return %c0_i32, %c0_i32_0, %c0_i32_1, %arg1 : i32, i32, i32, i32
  }
  func.func @transform_4(%arg0: i32, %arg1: i32, %arg2: i32) -> (i32, i32, i32, i32) {
    %c8_i32 = arith.constant 8 : i32
    %0 = arith.muli %arg0, %c8_i32 : i32
    %1 = arith.addi %0, %arg2 : i32
    %c0_i32 = arith.constant 0 : i32
    %c0_i32_0 = arith.constant 0 : i32
    %c0_i32_1 = arith.constant 0 : i32
    return %c0_i32, %1, %c0_i32_0, %arg1 : i32, i32, i32, i32
  }
  func.func @transform_5(%arg0: i32, %arg1: i32, %arg2: i32) -> (i32, i32, i32) {
    %c0_i32 = arith.constant 0 : i32
    %c0_i32_0 = arith.constant 0 : i32
    return %arg0, %c0_i32, %arg1 : i32, i32, i32
  }
}

</mosaic_0001>

<llo_original>
// kernel: conv_block_forward.3
$region0: #{conv_block_forward.3}
  #allocation0 [shape = 'u32[]', space=smem, size = 0x4, offset = 0x4, fixed_abs, tag = 'smem constant byte address 0x4 - core index']
  #allocation1 [shape = 'u32[144,128]{1,0:T(1,128)}', space=vmem, size = 0x12000, scoped, tag = 'internal scratch']
  %s0 = inlined_call_operand.vmem [shape: f32[512,128], index: 0, kind: input, shape index: {}, may-alias: {0,3}]
  %s1 = inlined_call_operand.vmem [shape: f32[1,128], index: 1, kind: input, shape index: {}]
  %s2 = inlined_call_operand.vmem [shape: f32[1,128], index: 2, kind: input, shape index: {}]
  %s3 = inlined_call_operand.vmem [shape: f32[512,128], index: 3, kind: output, shape index: {}, may-alias: {0,3}]
  %s4 = sld [smem:[#allocation0]]
  $region22: #{conv_block_forward.3} parent=0
    _
  %s6 = ssub.s32 1, %s4
  %s7 = scalar_select 0, %s6, %s4
  // Predicated region
  $region2: #{conv_block_forward.3} parent=0 // pred_check
    _
  $region3: #{conv_block_forward.3} parent=0 // pred_check_branch
    %9 = sbr.rel (0) target = $region5
  $region4: #{conv_block_forward.3} parent=0 // pred_region
    _
  $region5: #{conv_block_forward.3} parent=0 // pred_fallthru
    _
  // Predicated region
  $region6: #{conv_block_forward.3} parent=0 // pred_check
    _
  $region7: #{conv_block_forward.3} parent=0 // pred_check_branch
    %11 = sbr.rel (0) target = $region9
  $region8: #{conv_block_forward.3} parent=0 // pred_region
    _
  $region9: #{conv_block_forward.3} parent=0 // pred_fallthru
    _
  // Predicated region
  $region10: #{conv_block_forward.3} parent=0 // pred_check
    _
  $region11: #{conv_block_forward.3} parent=0 // pred_check_branch
    %13 = sbr.rel (0) target = $region13
  $region12: #{conv_block_forward.3} parent=0 // pred_region
    _
  $region13: #{conv_block_forward.3} parent=0 // pred_fallthru
    _
  %v14 = vld [vmem:[%s0] sm:$0xff]
  %v15 = vld [vmem:[%s0 + $0x8] sm:$0xff]
  %v16 = vld [vmem:[%s0 + $0x10] sm:$0xff]
  %v17 = vld [vmem:[%s0 + $0x18] sm:$0xff]
  %v18 = vld [vmem:[%s0 + $0x20] sm:$0xff]
  %v19 = vld [vmem:[%s0 + $0x28] sm:$0xff]
  %v20 = vld [vmem:[%s0 + $0x30] sm:$0xff]
  %v21 = vld [vmem:[%s0 + $0x38] sm:$0xff]
  %v22 = vld [vmem:[%s0 + $0x40] sm:$0xff]
  %v23 = vld [vmem:[%s0 + $0x48] sm:$0xff]
  %v24 = vld [vmem:[%s0 + $0x50] sm:$0xff]
  %v25 = vld [vmem:[%s0 + $0x58] sm:$0xff]
  %v26 = vld [vmem:[%s0 + $0x60] sm:$0xff]
  %v27 = vld [vmem:[%s0 + $0x68] sm:$0xff]
  %v28 = vld [vmem:[%s0 + $0x70] sm:$0xff]
  %v29 = vld [vmem:[%s0 + $0x78] sm:$0xff]
  %v30 = vld [vmem:[%s0 + $0x80] sm:$0xff]
  %v31 = vld [vmem:[%s0 + $0x88] sm:$0xff]
  %v32 = vld [vmem:[%s0 + $0x90] sm:$0xff]
  %v33 = vld [vmem:[%s0 + $0x98] sm:$0xff]
  %v34 = vld [vmem:[%s0 + $0xa0] sm:$0xff]
  %v35 = vld [vmem:[%s0 + $0xa8] sm:$0xff]
  %v36 = vld [vmem:[%s0 + $0xb0] sm:$0xff]
  %v37 = vld [vmem:[%s0 + $0xb8] sm:$0xff]
  %v38 = vld [vmem:[%s0 + $0xc0] sm:$0xff]
  %v39 = vld [vmem:[%s0 + $0xc8] sm:$0xff]
  %v40 = vld [vmem:[%s0 + $0xd0] sm:$0xff]
  %v41 = vld [vmem:[%s0 + $0xd8] sm:$0xff]
  %v42 = vld [vmem:[%s0 + $0xe0] sm:$0xff]
  %v43 = vld [vmem:[%s0 + $0xe8] sm:$0xff]
  %v44 = vld [vmem:[%s0 + $0xf0] sm:$0xff]
  %v45 = vld [vmem:[%s0 + $0xf8] sm:$0xff]
  %v46 = vld [vmem:[%s0 + $0x100] sm:$0xff]
  %v47 = vld [vmem:[%s0 + $0x108] sm:$0xff]
  %v48 = vld [vmem:[%s0 + $0x110] sm:$0xff]
  %v49 = vld [vmem:[%s0 + $0x118] sm:$0xff]
  %v50 = vld [vmem:[%s0 + $0x120] sm:$0xff]
  %v51 = vld [vmem:[%s0 + $0x128] sm:$0xff]
  %v52 = vld [vmem:[%s0 + $0x130] sm:$0xff]
  %v53 = vld [vmem:[%s0 + $0x138] sm:$0xff]
  %v54 = vld [vmem:[%s0 + $0x140] sm:$0xff]
  %v55 = vld [vmem:[%s0 + $0x148] sm:$0xff]
  %v56 = vld [vmem:[%s0 + $0x150] sm:$0xff]
  %v57 = vld [vmem:[%s0 + $0x158] sm:$0xff]
  %v58 = vld [vmem:[%s0 + $0x160] sm:$0xff]
  %v59 = vld [vmem:[%s0 + $0x168] sm:$0xff]
  %v60 = vld [vmem:[%s0 + $0x170] sm:$0xff]
  %v61 = vld [vmem:[%s0 + $0x178] sm:$0xff]
  %v62 = vld [vmem:[%s0 + $0x180] sm:$0xff]
  %v63 = vld [vmem:[%s0 + $0x188] sm:$0xff]
  %v64 = vld [vmem:[%s0 + $0x190] sm:$0xff]
  %v65 = vld [vmem:[%s0 + $0x198] sm:$0xff]
  %v66 = vld [vmem:[%s0 + $0x1a0] sm:$0xff]
  %v67 = vld [vmem:[%s0 + $0x1a8] sm:$0xff]
  %v68 = vld [vmem:[%s0 + $0x1b0] sm:$0xff]
  %v69 = vld [vmem:[%s0 + $0x1b8] sm:$0xff]
  %v70 = vld [vmem:[%s0 + $0x1c0] sm:$0xff]
  %v71 = vld [vmem:[%s0 + $0x1c8] sm:$0xff]
  %v72 = vld [vmem:[%s0 + $0x1d0] sm:$0xff]
  %v73 = vld [vmem:[%s0 + $0x1d8] sm:$0xff]
  %v74 = vld [vmem:[%s0 + $0x1e0] sm:$0xff]
  %v75 = vld [vmem:[%s0 + $0x1e8] sm:$0xff]
  %v76 = vld [vmem:[%s0 + $0x1f0] sm:$0xff]
  %v77 = vld [vmem:[%s0 + $0x1f8] sm:$0xff]
  %v78 = vld [vmem:[%s1] sm:$0x1]
  %v80 = vlaneseq
  %v81 = vshrl.u32 %v80, 7
  %v82 = vsub.s32 0, %v81
  %v83 = vrot.slane %v78, %v82
  %v85 = vmul.f32 %v14, %v83
  %v86 = vmul.f32 %v15, %v83
  %v87 = vmul.f32 %v16, %v83
  %v88 = vmul.f32 %v17, %v83
  %v89 = vmul.f32 %v18, %v83
  %v90 = vmul.f32 %v19, %v83
  %v91 = vmul.f32 %v20, %v83
  %v92 = vmul.f32 %v21, %v83
  %v93 = vmul.f32 %v22, %v83
  %v94 = vmul.f32 %v23, %v83
  %v95 = vmul.f32 %v24, %v83
  %v96 = vmul.f32 %v25, %v83
  %v97 = vmul.f32 %v26, %v83
  %v98 = vmul.f32 %v27, %v83
  %v99 = vmul.f32 %v28, %v83
  %v100 = vmul.f32 %v29, %v83
  %v101 = vmul.f32 %v30, %v83
  %v102 = vmul.f32 %v31, %v83
  %v103 = vmul.f32 %v32, %v83
  %v104 = vmul.f32 %v33, %v83
  %v105 = vmul.f32 %v34, %v83
  %v106 = vmul.f32 %v35, %v83
  %v107 = vmul.f32 %v36, %v83
  %v108 = vmul.f32 %v37, %v83
  %v109 = vmul.f32 %v38, %v83
  %v110 = vmul.f32 %v39, %v83
  %v111 = vmul.f32 %v40, %v83
  %v112 = vmul.f32 %v41, %v83
  %v113 = vmul.f32 %v42, %v83
  %v114 = vmul.f32 %v43, %v83
  %v115 = vmul.f32 %v44, %v83
  %v116 = vmul.f32 %v45, %v83
  %v117 = vmul.f32 %v46, %v83
  %v118 = vmul.f32 %v47, %v83
  %v119 = vmul.f32 %v48, %v83
  %v120 = vmul.f32 %v49, %v83
  %v121 = vmul.f32 %v50, %v83
  %v122 = vmul.f32 %v51, %v83
  %v123 = vmul.f32 %v52, %v83
  %v124 = vmul.f32 %v53, %v83
  %v125 = vmul.f32 %v54, %v83
  %v126 = vmul.f32 %v55, %v83
  %v127 = vmul.f32 %v56, %v83
  %v128 = vmul.f32 %v57, %v83
  %v129 = vmul.f32 %v58, %v83
  %v130 = vmul.f32 %v59, %v83
  %v131 = vmul.f32 %v60, %v83
  %v132 = vmul.f32 %v61, %v83
  %v133 = vmul.f32 %v62, %v83
  %v134 = vmul.f32 %v63, %v83
  %v135 = vmul.f32 %v64, %v83
  %v136 = vmul.f32 %v65, %v83
  %v137 = vmul.f32 %v66, %v83
  %v138 = vmul.f32 %v67, %v83
  %v139 = vmul.f32 %v68, %v83
  %v140 = vmul.f32 %v69, %v83
  %v141 = vmul.f32 %v70, %v83
  %v142 = vmul.f32 %v71, %v83
  %v143 = vmul.f32 %v72, %v83
  %v144 = vmul.f32 %v73, %v83
  %v145 = vmul.f32 %v74, %v83
  %v146 = vmul.f32 %v75, %v83
  %v147 = vmul.f32 %v76, %v83
  %v148 = vmul.f32 %v77, %v83
  %v149 = vld [vmem:[%s2] sm:$0x1]
  %v151 = vlaneseq
  %v152 = vshrl.u32 %v151, 7
  %v153 = vsub.s32 0, %v152
  %v154 = vrot.slane %v149, %v153
  %v156 = vadd.f32 %v85, %v154
  %v157 = vadd.f32 %v86, %v154
  %v158 = vadd.f32 %v87, %v154
  %v159 = vadd.f32 %v88, %v154
  %v160 = vadd.f32 %v89, %v154
  %v161 = vadd.f32 %v90, %v154
  %v162 = vadd.f32 %v91, %v154
  %v163 = vadd.f32 %v92, %v154
  %v164 = vadd.f32 %v93, %v154
  %v165 = vadd.f32 %v94, %v154
  %v166 = vadd.f32 %v95, %v154
  %v167 = vadd.f32 %v96, %v154
  %v168 = vadd.f32 %v97, %v154
  %v169 = vadd.f32 %v98, %v154
  %v170 = vadd.f32 %v99, %v154
  %v171 = vadd.f32 %v100, %v154
  %v172 = vadd.f32 %v101, %v154
  %v173 = vadd.f32 %v102, %v154
  %v174 = vadd.f32 %v103, %v154
  %v175 = vadd.f32 %v104, %v154
  %v176 = vadd.f32 %v105, %v154
  %v177 = vadd.f32 %v106, %v154
  %v178 = vadd.f32 %v107, %v154
  %v179 = vadd.f32 %v108, %v154
  %v180 = vadd.f32 %v109, %v154
  %v181 = vadd.f32 %v110, %v154
  %v182 = vadd.f32 %v111, %v154
  %v183 = vadd.f32 %v112, %v154
  %v184 = vadd.f32 %v113, %v154
  %v185 = vadd.f32 %v114, %v154
  %v186 = vadd.f32 %v115, %v154
  %v187 = vadd.f32 %v116, %v154
  %v188 = vadd.f32 %v117, %v154
  %v189 = vadd.f32 %v118, %v154
  %v190 = vadd.f32 %v119, %v154
  %v191 = vadd.f32 %v120, %v154
  %v192 = vadd.f32 %v121, %v154
  %v193 = vadd.f32 %v122, %v154
  %v194 = vadd.f32 %v123, %v154
  %v195 = vadd.f32 %v124, %v154
  %v196 = vadd.f32 %v125, %v154
  %v197 = vadd.f32 %v126, %v154
  %v198 = vadd.f32 %v127, %v154
  %v199 = vadd.f32 %v128, %v154
  %v200 = vadd.f32 %v129, %v154
  %v201 = vadd.f32 %v130, %v154
  %v202 = vadd.f32 %v131, %v154
  %v203 = vadd.f32 %v132, %v154
  %v204 = vadd.f32 %v133, %v154
  %v205 = vadd.f32 %v134, %v154
  %v206 = vadd.f32 %v135, %v154
  %v207 = vadd.f32 %v136, %v154
  %v208 = vadd.f32 %v137, %v154
  %v209 = vadd.f32 %v138, %v154
  %v210 = vadd.f32 %v139, %v154
  %v211 = vadd.f32 %v140, %v154
  %v212 = vadd.f32 %v141, %v154
  %v213 = vadd.f32 %v142, %v154
  %v214 = vadd.f32 %v143, %v154
  %v215 = vadd.f32 %v144, %v154
  %v216 = vadd.f32 %v145, %v154
  %v217 = vadd.f32 %v146, %v154
  %v218 = vadd.f32 %v147, %v154
  %v219 = vadd.f32 %v148, %v154
  %vm220 = vcmp.ge.f32.partialorder %v156, 0.0
  %vm221 = vcmp.ge.f32.partialorder %v157, 0.0
  %vm222 = vcmp.ge.f32.partialorder %v158, 0.0
  %vm223 = vcmp.ge.f32.partialorder %v159, 0.0
  %vm224 = vcmp.ge.f32.partialorder %v160, 0.0
  %vm225 = vcmp.ge.f32.partialorder %v161, 0.0
  %vm226 = vcmp.ge.f32.partialorder %v162, 0.0
  %vm227 = vcmp.ge.f32.partialorder %v163, 0.0
  %vm228 = vcmp.ge.f32.partialorder %v164, 0.0
  %vm229 = vcmp.ge.f32.partialorder %v165, 0.0
  %vm230 = vcmp.ge.f32.partialorder %v166, 0.0
  %vm231 = vcmp.ge.f32.partialorder %v167, 0.0
  %vm232 = vcmp.ge.f32.partialorder %v168, 0.0
  %vm233 = vcmp.ge.f32.partialorder %v169, 0.0
  %vm234 = vcmp.ge.f32.partialorder %v170, 0.0
  %vm235 = vcmp.ge.f32.partialorder %v171, 0.0
  %vm236 = vcmp.ge.f32.partialorder %v172, 0.0
  %vm237 = vcmp.ge.f32.partialorder %v173, 0.0
  %vm238 = vcmp.ge.f32.partialorder %v174, 0.0
  %vm239 = vcmp.ge.f32.partialorder %v175, 0.0
  %vm240 = vcmp.ge.f32.partialorder %v176, 0.0
  %vm241 = vcmp.ge.f32.partialorder %v177, 0.0
  %vm242 = vcmp.ge.f32.partialorder %v178, 0.0
  %vm243 = vcmp.ge.f32.partialorder %v179, 0.0
  %vm244 = vcmp.ge.f32.partialorder %v180, 0.0
  %vm245 = vcmp.ge.f32.partialorder %v181, 0.0
  %vm246 = vcmp.ge.f32.partialorder %v182, 0.0
  %vm247 = vcmp.ge.f32.partialorder %v183, 0.0
  %vm248 = vcmp.ge.f32.partialorder %v184, 0.0
  %vm249 = vcmp.ge.f32.partialorder %v185, 0.0
  %vm250 = vcmp.ge.f32.partialorder %v186, 0.0
  %vm251 = vcmp.ge.f32.partialorder %v187, 0.0
  %vm252 = vcmp.ge.f32.partialorder %v188, 0.0
  %vm253 = vcmp.ge.f32.partialorder %v189, 0.0
  %vm254 = vcmp.ge.f32.partialorder %v190, 0.0
  %vm255 = vcmp.ge.f32.partialorder %v191, 0.0
  %vm256 = vcmp.ge.f32.partialorder %v192, 0.0
  %vm257 = vcmp.ge.f32.partialorder %v193, 0.0
  %vm258 = vcmp.ge.f32.partialorder %v194, 0.0
  %vm259 = vcmp.ge.f32.partialorder %v195, 0.0
  %vm260 = vcmp.ge.f32.partialorder %v196, 0.0
  %vm261 = vcmp.ge.f32.partialorder %v197, 0.0
  %vm262 = vcmp.ge.f32.partialorder %v198, 0.0
  %vm263 = vcmp.ge.f32.partialorder %v199, 0.0
  %vm264 = vcmp.ge.f32.partialorder %v200, 0.0
  %vm265 = vcmp.ge.f32.partialorder %v201, 0.0
  %vm266 = vcmp.ge.f32.partialorder %v202, 0.0
  %vm267 = vcmp.ge.f32.partialorder %v203, 0.0
  %vm268 = vcmp.ge.f32.partialorder %v204, 0.0
  %vm269 = vcmp.ge.f32.partialorder %v205, 0.0
  %vm270 = vcmp.ge.f32.partialorder %v206, 0.0
  %vm271 = vcmp.ge.f32.partialorder %v207, 0.0
  %vm272 = vcmp.ge.f32.partialorder %v208, 0.0
  %vm273 = vcmp.ge.f32.partialorder %v209, 0.0
  %vm274 = vcmp.ge.f32.partialorder %v210, 0.0
  %vm275 = vcmp.ge.f32.partialorder %v211, 0.0
  %vm276 = vcmp.ge.f32.partialorder %v212, 0.0
  %vm277 = vcmp.ge.f32.partialorder %v213, 0.0
  %vm278 = vcmp.ge.f32.partialorder %v214, 0.0
  %vm279 = vcmp.ge.f32.partialorder %v215, 0.0
  %vm280 = vcmp.ge.f32.partialorder %v216, 0.0
  %vm281 = vcmp.ge.f32.partialorder %v217, 0.0
  %vm282 = vcmp.ge.f32.partialorder %v218, 0.0
  %vm283 = vcmp.ge.f32.partialorder %v219, 0.0
  %v284 = vmul.f32 %v156, 0.1
  %v285 = vmul.f32 %v157, 0.1
  %v286 = vmul.f32 %v158, 0.1
  %v287 = vmul.f32 %v159, 0.1
  %v288 = vmul.f32 %v160, 0.1
  %v289 = vmul.f32 %v161, 0.1
  %v290 = vmul.f32 %v162, 0.1
  %v291 = vmul.f32 %v163, 0.1
  %v292 = vmul.f32 %v164, 0.1
  %v293 = vmul.f32 %v165, 0.1
  %v294 = vmul.f32 %v166, 0.1
  %v295 = vmul.f32 %v167, 0.1
  %v296 = vmul.f32 %v168, 0.1
  %v297 = vmul.f32 %v169, 0.1
  %v298 = vmul.f32 %v170, 0.1
  %v299 = vmul.f32 %v171, 0.1
  %v300 = vmul.f32 %v172, 0.1
  %v301 = vmul.f32 %v173, 0.1
  %v302 = vmul.f32 %v174, 0.1
  %v303 = vmul.f32 %v175, 0.1
  %v304 = vmul.f32 %v176, 0.1
  %v305 = vmul.f32 %v177, 0.1
  %v306 = vmul.f32 %v178, 0.1
  %v307 = vmul.f32 %v179, 0.1
  %v308 = vmul.f32 %v180, 0.1
  %v309 = vmul.f32 %v181, 0.1
  %v310 = vmul.f32 %v182, 0.1
  %v311 = vmul.f32 %v183, 0.1
  %v312 = vmul.f32 %v184, 0.1
  %v313 = vmul.f32 %v185, 0.1
  %v314 = vmul.f32 %v186, 0.1
  %v315 = vmul.f32 %v187, 0.1
  %v316 = vmul.f32 %v188, 0.1
  %v317 = vmul.f32 %v189, 0.1
  %v318 = vmul.f32 %v190, 0.1
  %v319 = vmul.f32 %v191, 0.1
  %v320 = vmul.f32 %v192, 0.1
  %v321 = vmul.f32 %v193, 0.1
  %v322 = vmul.f32 %v194, 0.1
  %v323 = vmul.f32 %v195, 0.1
  %v324 = vmul.f32 %v196, 0.1
  %v325 = vmul.f32 %v197, 0.1
  %v326 = vmul.f32 %v198, 0.1
  %v327 = vmul.f32 %v199, 0.1
  %v328 = vmul.f32 %v200, 0.1
  %v329 = vmul.f32 %v201, 0.1
  %v330 = vmul.f32 %v202, 0.1
  %v331 = vmul.f32 %v203, 0.1
  %v332 = vmul.f32 %v204, 0.1
  %v333 = vmul.f32 %v205, 0.1
  %v334 = vmul.f32 %v206, 0.1
  %v335 = vmul.f32 %v207, 0.1
  %v336 = vmul.f32 %v208, 0.1
  %v337 = vmul.f32 %v209, 0.1
  %v338 = vmul.f32 %v210, 0.1
  %v339 = vmul.f32 %v211, 0.1
  %v340 = vmul.f32 %v212, 0.1
  %v341 = vmul.f32 %v213, 0.1
  %v342 = vmul.f32 %v214, 0.1
  %v343 = vmul.f32 %v215, 0.1
  %v344 = vmul.f32 %v216, 0.1
  %v345 = vmul.f32 %v217, 0.1
  %v346 = vmul.f32 %v218, 0.1
  %v347 = vmul.f32 %v219, 0.1
  %v348 = vsel %vm220, %v156, %v284
  %v349 = vsel %vm221, %v157, %v285
  %v350 = vsel %vm222, %v158, %v286
  %v351 = vsel %vm223, %v159, %v287
  %v352 = vsel %vm224, %v160, %v288
  %v353 = vsel %vm225, %v161, %v289
  %v354 = vsel %vm226, %v162, %v290
  %v355 = vsel %vm227, %v163, %v291
  %v356 = vsel %vm228, %v164, %v292
  %v357 = vsel %vm229, %v165, %v293
  %v358 = vsel %vm230, %v166, %v294
  %v359 = vsel %vm231, %v167, %v295
  %v360 = vsel %vm232, %v168, %v296
  %v361 = vsel %vm233, %v169, %v297
  %v362 = vsel %vm234, %v170, %v298
  %v363 = vsel %vm235, %v171, %v299
  %v364 = vsel %vm236, %v172, %v300
  %v365 = vsel %vm237, %v173, %v301
  %v366 = vsel %vm238, %v174, %v302
  %v367 = vsel %vm239, %v175, %v303
  %v368 = vsel %vm240, %v176, %v304
  %v369 = vsel %vm241, %v177, %v305
  %v370 = vsel %vm242, %v178, %v306
  %v371 = vsel %vm243, %v179, %v307
  %v372 = vsel %vm244, %v180, %v308
  %v373 = vsel %vm245, %v181, %v309
  %v374 = vsel %vm246, %v182, %v310
  %v375 = vsel %vm247, %v183, %v311
  %v376 = vsel %vm248, %v184, %v312
  %v377 = vsel %vm249, %v185, %v313
  %v378 = vsel %vm250, %v186, %v314
  %v379 = vsel %vm251, %v187, %v315
  %v380 = vsel %vm252, %v188, %v316
  %v381 = vsel %vm253, %v189, %v317
  %v382 = vsel %vm254, %v190, %v318
  %v383 = vsel %vm255, %v191, %v319
  %v384 = vsel %vm256, %v192, %v320
  %v385 = vsel %vm257, %v193, %v321
  %v386 = vsel %vm258, %v194, %v322
  %v387 = vsel %vm259, %v195, %v323
  %v388 = vsel %vm260, %v196, %v324
  %v389 = vsel %vm261, %v197, %v325
  %v390 = vsel %vm262, %v198, %v326
  %v391 = vsel %vm263, %v199, %v327
  %v392 = vsel %vm264, %v200, %v328
  %v393 = vsel %vm265, %v201, %v329
  %v394 = vsel %vm266, %v202, %v330
  %v395 = vsel %vm267, %v203, %v331
  %v396 = vsel %vm268, %v204, %v332
  %v397 = vsel %vm269, %v205, %v333
  %v398 = vsel %vm270, %v206, %v334
  %v399 = vsel %vm271, %v207, %v335
  %v400 = vsel %vm272, %v208, %v336
  %v401 = vsel %vm273, %v209, %v337
  %v402 = vsel %vm274, %v210, %v338
  %v403 = vsel %vm275, %v211, %v339
  %v404 = vsel %vm276, %v212, %v340
  %v405 = vsel %vm277, %v213, %v341
  %v406 = vsel %vm278, %v214, %v342
  %v407 = vsel %vm279, %v215, %v343
  %v408 = vsel %vm280, %v216, %v344
  %v409 = vsel %vm281, %v217, %v345
  %v410 = vsel %vm282, %v218, %v346
  %v411 = vsel %vm283, %v219, %v347
  %412 = vst [vmem:[%s3] sm:$0xff] %v348
  %413 = vst [vmem:[%s3 + $0x8] sm:$0xff] %v349
  %414 = vst [vmem:[%s3 + $0x10] sm:$0xff] %v350
  %415 = vst [vmem:[%s3 + $0x18] sm:$0xff] %v351
  %416 = vst [vmem:[%s3 + $0x20] sm:$0xff] %v352
  %417 = vst [vmem:[%s3 + $0x28] sm:$0xff] %v353
  %418 = vst [vmem:[%s3 + $0x30] sm:$0xff] %v354
  %419 = vst [vmem:[%s3 + $0x38] sm:$0xff] %v355
  %420 = vst [vmem:[%s3 + $0x40] sm:$0xff] %v356
  %421 = vst [vmem:[%s3 + $0x48] sm:$0xff] %v357
  %422 = vst [vmem:[%s3 + $0x50] sm:$0xff] %v358
  %423 = vst [vmem:[%s3 + $0x58] sm:$0xff] %v359
  %424 = vst [vmem:[%s3 + $0x60] sm:$0xff] %v360
  %425 = vst [vmem:[%s3 + $0x68] sm:$0xff] %v361
  %426 = vst [vmem:[%s3 + $0x70] sm:$0xff] %v362
  %427 = vst [vmem:[%s3 + $0x78] sm:$0xff] %v363
  %428 = vst [vmem:[%s3 + $0x80] sm:$0xff] %v364
  %429 = vst [vmem:[%s3 + $0x88] sm:$0xff] %v365
  %430 = vst [vmem:[%s3 + $0x90] sm:$0xff] %v366
  %431 = vst [vmem:[%s3 + $0x98] sm:$0xff] %v367
  %432 = vst [vmem:[%s3 + $0xa0] sm:$0xff] %v368
  %433 = vst [vmem:[%s3 + $0xa8] sm:$0xff] %v369
  %434 = vst [vmem:[%s3 + $0xb0] sm:$0xff] %v370
  %435 = vst [vmem:[%s3 + $0xb8] sm:$0xff] %v371
  %436 = vst [vmem:[%s3 + $0xc0] sm:$0xff] %v372
  %437 = vst [vmem:[%s3 + $0xc8] sm:$0xff] %v373
  %438 = vst [vmem:[%s3 + $0xd0] sm:$0xff] %v374
  %439 = vst [vmem:[%s3 + $0xd8] sm:$0xff] %v375
  %440 = vst [vmem:[%s3 + $0xe0] sm:$0xff] %v376
  %441 = vst [vmem:[%s3 + $0xe8] sm:$0xff] %v377
  %442 = vst [vmem:[%s3 + $0xf0] sm:$0xff] %v378
  %443 = vst [vmem:[%s3 + $0xf8] sm:$0xff] %v379
  %444 = vst [vmem:[%s3 + $0x100] sm:$0xff] %v380
  %445 = vst [vmem:[%s3 + $0x108] sm:$0xff] %v381
  %446 = vst [vmem:[%s3 + $0x110] sm:$0xff] %v382
  %447 = vst [vmem:[%s3 + $0x118] sm:$0xff] %v383
  %448 = vst [vmem:[%s3 + $0x120] sm:$0xff] %v384
  %449 = vst [vmem:[%s3 + $0x128] sm:$0xff] %v385
  %450 = vst [vmem:[%s3 + $0x130] sm:$0xff] %v386
  %451 = vst [vmem:[%s3 + $0x138] sm:$0xff] %v387
  %452 = vst [vmem:[%s3 + $0x140] sm:$0xff] %v388
  %453 = vst [vmem:[%s3 + $0x148] sm:$0xff] %v389
  %454 = vst [vmem:[%s3 + $0x150] sm:$0xff] %v390
  %455 = vst [vmem:[%s3 + $0x158] sm:$0xff] %v391
  %456 = vst [vmem:[%s3 + $0x160] sm:$0xff] %v392
  %457 = vst [vmem:[%s3 + $0x168] sm:$0xff] %v393
  %458 = vst [vmem:[%s3 + $0x170] sm:$0xff] %v394
  %459 = vst [vmem:[%s3 + $0x178] sm:$0xff] %v395
  %460 = vst [vmem:[%s3 + $0x180] sm:$0xff] %v396
  %461 = vst [vmem:[%s3 + $0x188] sm:$0xff] %v397
  %462 = vst [vmem:[%s3 + $0x190] sm:$0xff] %v398
  %463 = vst [vmem:[%s3 + $0x198] sm:$0xff] %v399
  %464 = vst [vmem:[%s3 + $0x1a0] sm:$0xff] %v400
  %465 = vst [vmem:[%s3 + $0x1a8] sm:$0xff] %v401
  %466 = vst [vmem:[%s3 + $0x1b0] sm:$0xff] %v402
  %467 = vst [vmem:[%s3 + $0x1b8] sm:$0xff] %v403
  %468 = vst [vmem:[%s3 + $0x1c0] sm:$0xff] %v404
  %469 = vst [vmem:[%s3 + $0x1c8] sm:$0xff] %v405
  %470 = vst [vmem:[%s3 + $0x1d0] sm:$0xff] %v406
  %471 = vst [vmem:[%s3 + $0x1d8] sm:$0xff] %v407
  %472 = vst [vmem:[%s3 + $0x1e0] sm:$0xff] %v408
  %473 = vst [vmem:[%s3 + $0x1e8] sm:$0xff] %v409
  %474 = vst [vmem:[%s3 + $0x1f0] sm:$0xff] %v410
  %475 = vst [vmem:[%s3 + $0x1f8] sm:$0xff] %v411
  // Predicated region
  $region14: #{conv_block_forward.3} parent=0 // pred_check
    _
  $region15: #{conv_block_forward.3} parent=0 // pred_check_branch
    %477 = sbr.rel (0) target = $region17
  $region16: #{conv_block_forward.3} parent=0 // pred_region
    _
  $region17: #{conv_block_forward.3} parent=0 // pred_fallthru
    _
  // Predicated region
  $region18: #{conv_block_forward.3} parent=0 // pred_check
    _
  $region19: #{conv_block_forward.3} parent=0 // pred_check_branch
    %479 = sbr.rel (0) target = $region21
  $region20: #{conv_block_forward.3} parent=0 // pred_region
    _
  $region21: #{conv_block_forward.3} parent=0 // pred_fallthru
    _

// kernel: conv_block_forward.2
$region0: #{conv_block_forward.2}
  #allocation0 [shape = 'u32[]', space=smem, size = 0x4, offset = 0x4, fixed_abs, tag = 'smem constant byte address 0x4 - core index']
  #allocation1 [shape = 'u32[144,128]{1,0:T(1,128)}', space=vmem, size = 0x12000, scoped, tag = 'internal scratch']
  #allocation2 [shape = 'f32[2,128]{1,0:T(2,128)}', space=vmem, size = 0x400, scoped, tag = 'scratch operand']
  %s0 = inlined_call_operand.vmem [shape: bf16[2,18,18,4], index: 0, kind: input, shape index: {}, may-alias: {0,1,2}]
  %s1 = inlined_call_operand.vmem [shape: bf16[2,18,18,4], index: 1, kind: input, shape index: {}, may-alias: {0,1,2}]
  %s2 = inlined_call_operand.vmem [shape: bf16[2,18,18,4], index: 2, kind: input, shape index: {}, may-alias: {0,1,2}]
  %s3 = inlined_call_operand.vmem [shape: bf16[3,3,4,128], index: 3, kind: input, shape index: {}]
  %s4 = inlined_call_operand.vmem [shape: f32[2,16,16,128], index: 4, kind: output, shape index: {0}]
  %s5 = inlined_call_operand.vmem [shape: f32[2,2,128], index: 5, kind: output, shape index: {1}]
  %6 = xla_tuple %s4, %s5
  %s7 = sld [smem:[#allocation0]]
  $region222: #{conv_block_forward.2} parent=0
    _
  %s9 = ssub.s32 1, %s7
  %s10 = scalar_select 0, %s9, %s7
  $region1: #{conv_block_forward.2} parent=0
    #allocation3 [shape = 'u8[24576]{0}', space=vmem, size = 0x6000, scoped, tag = 'input window, operand 0']
    #allocation4 [shape = 'u8[24576]{0}', space=vmem, size = 0x6000, scoped, tag = 'input window, operand 1']
    #allocation5 [shape = 'u8[24576]{0}', space=vmem, size = 0x6000, scoped, tag = 'input window, operand 2']
    #allocation6 [shape = 'u8[32768]{0}', space=vmem, size = 0x8000, scoped, tag = 'output window, operand 0']
    loop: start=0, step=1, limit=18
    $region2: #{conv_block_forward.2} parent=1 // loop_pre_header
      _
    $region3: #{conv_block_forward.2} parent=1 // loop_header
      %s12 = sphi 0, %s16
      %p13 = scmp.ge.s32.totalorder %s12, 18
      %s19 = sphi 0, %s38
      %s20 = sphi 0, %s34
      %s21 = sphi 0, %s30
      %s22 = sphi 0, %s19
      %s23 = sphi 0, %s20
      %s24 = sphi 0, %s21
      %s25 = sphi 0, %s22
      %s26 = sphi 0, %s23
      %s27 = sphi 0, %s24
      %s45 = sphi 0, %s47
      %s48 = sphi 0, %s45
      %s49 = sphi 0, %s48
      %s65 = sphi 0, %s49
      %s77 = sphi 0, %s79
      %s80 = sphi 0, %s77
      %s81 = sphi 0, %s80
      %s97 = sphi 0, %s81
      %s109 = sphi 0, %s111
      %s112 = sphi 0, %s109
      %s113 = sphi 0, %s112
      %s129 = sphi 0, %s113
      %s135 = sphi 0, %s137
      %s138 = sphi 0, %s135
      %s139 = sphi 0, %s138
      %s155 = sphi 0, %s139
      %s167 = sphi 0, %s169
      %s170 = sphi 0, %s167
      %s171 = sphi 0, %s170
      %s187 = sphi 0, %s171
      %s195 = sphi 0, %s197
      %s198 = sphi 0, %s195
      %s199 = sphi 0, %s198
      %s215 = sphi 0, %s199
    $region4: #{conv_block_forward.2} parent=1 // loop_header_branch
      %15 = sbr.rel (%p13) target = $region8
    $region5: #{conv_block_forward.2} parent=1 // loop_body
      %s17 = ssub.s32 %s12, 1
      %s18 = ssub.s32 %s12, 2
      %s28 = sadd.s32 1, %s21
      %p29 = scmp.ge.s32.totalorder %s28, 8
      %s30 = scalar_select %p29, 0, %s28
      %s31 = sadd.s32 1, %s20
      %s32 = scalar_select %p29, %s31, %s20
      %p33 = scmp.ge.s32.totalorder %s32, 1
      %s34 = scalar_select %p33, 0, %s32
      %s35 = sadd.s32 1, %s19
      %s36 = scalar_select %p33, %s35, %s19
      %p37 = scmp.ge.s32.totalorder %s36, 2
      %s38 = scalar_select %p37, 0, %s36
      %s39 = smul.u32 %s19, 8
      %s40 = sadd.s32 %s39, %s21
      %s41 = smul.u32 %s38, 8
      %s42 = sadd.s32 %s41, %s30
      %s43 = ssub.s32 %s40, %s42
      %p44 = scmp.eq.s32.totalorder %s43, 0
      %s46 = sadd.s32 %s45, 1
      %s47 = scalar_select %p44, %s45, %s46
      %p50 = pneg %p44
      %p51 = scmp.eq.s32.totalorder %s12, 15
      %p52 = por %p50, %p51
      %p53 = scmp.ne.s32.totalorder %s45, %s48
      %p54 = scmp.eq.s32.totalorder %s12, 0
      %p55 = por %p53, %p54
      %p56 = scmp.ne.s32.totalorder %s45, %s48
      %p57 = scmp.eq.s32.totalorder %s17, 15
      %p58 = por %p56, %p57
      %p59 = scmp.ne.s32.totalorder %s48, %s49
      %p60 = scmp.eq.s32.totalorder %s17, 0
      %p61 = por %p59, %p60
      %p62 = scmp.ne.s32.totalorder %s48, %s49
      %p63 = scmp.eq.s32.totalorder %s18, 15
      %p64 = por %p62, %p63
      %p66 = scmp.ne.s32.totalorder %s49, %s65
      %p67 = scmp.eq.s32.totalorder %s18, 0
      %p68 = por %p66, %p67
      %s69 = smul.u32 %s19, 8
      %s70 = sadd.s32 %s69, %s21
      %s71 = sadd.s32 %s70, 1
      %s72 = smul.u32 %s38, 8
      %s73 = sadd.s32 %s72, %s30
      %s74 = sadd.s32 %s73, 1
      %s75 = ssub.s32 %s71, %s74
      %p76 = scmp.eq.s32.totalorder %s75, 0
      %s78 = sadd.s32 %s77, 1
      %s79 = scalar_select %p76, %s77, %s78
      %p82 = pneg %p76
      %p83 = scmp.eq.s32.totalorder %s12, 15
      %p84 = por %p82, %p83
      %p85 = scmp.ne.s32.totalorder %s77, %s80
      %p86 = scmp.eq.s32.totalorder %s12, 0
      %p87 = por %p85, %p86
      %p88 = scmp.ne.s32.totalorder %s77, %s80
      %p89 = scmp.eq.s32.totalorder %s17, 15
      %p90 = por %p88, %p89
      %p91 = scmp.ne.s32.totalorder %s80, %s81
      %p92 = scmp.eq.s32.totalorder %s17, 0
      %p93 = por %p91, %p92
      %p94 = scmp.ne.s32.totalorder %s80, %s81
      %p95 = scmp.eq.s32.totalorder %s18, 15
      %p96 = por %p94, %p95
      %p98 = scmp.ne.s32.totalorder %s81, %s97
      %p99 = scmp.eq.s32.totalorder %s18, 0
      %p100 = por %p98, %p99
      %s101 = smul.u32 %s19, 8
      %s102 = sadd.s32 %s101, %s21
      %s103 = sadd.s32 %s102, 2
      %s104 = smul.u32 %s38, 8
      %s105 = sadd.s32 %s104, %s30
      %s106 = sadd.s32 %s105, 2
      %s107 = ssub.s32 %s103, %s106
      %p108 = scmp.eq.s32.totalorder %s107, 0
      %s110 = sadd.s32 %s109, 1
      %s111 = scalar_select %p108, %s109, %s110
      %p114 = pneg %p108
      %p115 = scmp.eq.s32.totalorder %s12, 15
      %p116 = por %p114, %p115
      %p117 = scmp.ne.s32.totalorder %s109, %s112
      %p118 = scmp.eq.s32.totalorder %s12, 0
      %p119 = por %p117, %p118
      %p120 = scmp.ne.s32.totalorder %s109, %s112
      %p121 = scmp.eq.s32.totalorder %s17, 15
      %p122 = por %p120, %p121
      %p123 = scmp.ne.s32.totalorder %s112, %s113
      %p124 = scmp.eq.s32.totalorder %s17, 0
      %p125 = por %p123, %p124
      %p126 = scmp.ne.s32.totalorder %s112, %s113
      %p127 = scmp.eq.s32.totalorder %s18, 15
      %p128 = por %p126, %p127
      %p130 = scmp.ne.s32.totalorder %s113, %s129
      %p131 = scmp.eq.s32.totalorder %s18, 0
      %p132 = por %p130, %p131
      %s133 = ssub.s32 %s20, %s34
      %p134 = scmp.eq.s32.totalorder %s133, 0
      %s136 = sadd.s32 %s135, 1
      %s137 = scalar_select %p134, %s135, %s136
      %p140 = pneg %p134
      %p141 = scmp.eq.s32.totalorder %s12, 15
      %p142 = por %p140, %p141
      %p143 = scmp.ne.s32.totalorder %s135, %s138
      %p144 = scmp.eq.s32.totalorder %s12, 0
      %p145 = por %p143, %p144
      %p146 = scmp.ne.s32.totalorder %s135, %s138
      %p147 = scmp.eq.s32.totalorder %s17, 15
      %p148 = por %p146, %p147
      %p149 = scmp.ne.s32.totalorder %s138, %s139
      %p150 = scmp.eq.s32.totalorder %s17, 0
      %p151 = por %p149, %p150
      %p152 = scmp.ne.s32.totalorder %s138, %s139
      %p153 = scmp.eq.s32.totalorder %s18, 15
      %p154 = por %p152, %p153
      %p156 = scmp.ne.s32.totalorder %s139, %s155
      %p157 = scmp.eq.s32.totalorder %s18, 0
      %p158 = por %p156, %p157
      %s159 = smul.u32 %s19, 8
      %s160 = sadd.s32 %s159, %s21
      %s161 = smul.u32 %s38, 8
      %s162 = sadd.s32 %s161, %s30
      %s163 = ssub.s32 %s160, %s162
      %s164 = ssub.s32 %s20, %s34
      %s165 = sor.u32 %s163, %s164
      %p166 = scmp.eq.s32.totalorder %s165, 0
      %s168 = sadd.s32 %s167, 1
      %s169 = scalar_select %p166, %s167, %s168
      %p172 = pneg %p166
      %p173 = scmp.eq.s32.totalorder %s12, 15
      %p174 = por %p172, %p173
      %p175 = scmp.ne.s32.totalorder %s167, %s170
      %p176 = scmp.eq.s32.totalorder %s12, 0
      %p177 = por %p175, %p176
      %p178 = scmp.ne.s32.totalorder %s167, %s170
      %p179 = scmp.eq.s32.totalorder %s17, 15
      %p180 = por %p178, %p179
      %p181 = scmp.ne.s32.totalorder %s170, %s171
      %p182 = scmp.eq.s32.totalorder %s17, 0
      %p183 = por %p181, %p182
      %p184 = scmp.ne.s32.totalorder %s170, %s171
      %p185 = scmp.eq.s32.totalorder %s18, 15
      %p186 = por %p184, %p185
      %p188 = scmp.ne.s32.totalorder %s171, %s187
      %p189 = scmp.eq.s32.totalorder %s18, 0
      %p190 = por %p188, %p189
      %s191 = ssub.s32 %s19, %s38
      %s192 = ssub.s32 %s20, %s34
      %s193 = sor.u32 %s191, %s192
      %p194 = scmp.eq.s32.totalorder %s193, 0
      %s196 = sadd.s32 %s195, 1
      %s197 = scalar_select %p194, %s195, %s196
      %p200 = pneg %p194
      %p201 = scmp.eq.s32.totalorder %s12, 15
      %p202 = por %p200, %p201
      %p203 = scmp.ne.s32.totalorder %s195, %s198
      %p204 = scmp.eq.s32.totalorder %s12, 0
      %p205 = por %p203, %p204
      %p206 = scmp.ne.s32.totalorder %s195, %s198
      %p207 = scmp.eq.s32.totalorder %s17, 15
      %p208 = por %p206, %p207
      %p209 = scmp.ne.s32.totalorder %s198, %s199
      %p210 = scmp.eq.s32.totalorder %s17, 0
      %p211 = por %p209, %p210
      %p212 = scmp.ne.s32.totalorder %s198, %s199
      %p213 = scmp.eq.s32.totalorder %s18, 15
      %p214 = por %p212, %p213
      %p216 = scmp.ne.s32.totalorder %s199, %s215
      %p217 = scmp.eq.s32.totalorder %s18, 0
      %p218 = por %p216, %p217
      %p219 = scmp.le.s32.totalorder 1, %s12
      %p220 = scmp.lt.s32.totalorder %s12, 17
      %p221 = pnand %p219, %p220
      %p222 = pneg %p221
      // Predicated region
      $region9: #{conv_block_forward.2} parent=5 // pred_check
        _
      $region10: #{conv_block_forward.2} parent=5 // pred_check_branch
        %224 = sbr.rel (%p221) target = $region12
      $region11: #{conv_block_forward.2} parent=5 // pred_region
        %s225 = ssub.s32 %s12, 1
        // Predicated region
        $region13: #{conv_block_forward.2} parent=11 // pred_check
          %p226 = pneg %p151
        $region14: #{conv_block_forward.2} parent=11 // pred_check_branch
          %228 = sbr.rel (%p226) target = $region16
        $region15: #{conv_block_forward.2} parent=11 // pred_region
          %p229 = scmp.lt.s32.totalorder %s23, 0
          %s230 = scalar_select %p229, %s23, 0
          %s231 = smul.addr %s230, 2
          %s232 = scalar_lea.vmem %s3, %s231
        $region16: #{conv_block_forward.2} parent=11 // pred_fallthru
          _
      $region12: #{conv_block_forward.2} parent=5 // pred_fallthru
        _
      %p233 = scmp.lt.s32.totalorder %s12, 16
      // Predicated region
      $region17: #{conv_block_forward.2} parent=5 // pred_check
        %p234 = pneg %p233
      $region18: #{conv_block_forward.2} parent=5 // pred_check_branch
        %236 = sbr.rel (%p234) target = $region20
      $region19: #{conv_block_forward.2} parent=5 // pred_region
        // Predicated region
        $region21: #{conv_block_forward.2} parent=19 // pred_check
          %p237 = pneg %p55
        $region22: #{conv_block_forward.2} parent=19 // pred_check_branch
          %239 = sbr.rel (%p237) target = $region24
        $region23: #{conv_block_forward.2} parent=19 // pred_region
          %s240 = sand.u32 %s45, 1
          %s241 = sand.u32 %s45, 1
          %s242 = smul.addr %s241, 24
          %s243 = scalar_lea.vmem [#allocation3], %s242
          %s244 = smul.u32 %s19, 8
          %s245 = sadd.s32 %s244, %s21
          %s246 = smul.addr %s245, 3
          %s247 = smul.addr %s246, 4
          %s248 = scalar_lea.vmem %s0, %s247
          // Predicated region
          $region25: #{conv_block_forward.2} parent=23 // pred_check
            _
          $region26: #{conv_block_forward.2} parent=23 // pred_check_branch
            %250 = sbr.rel (0) target = $region28
          $region27: #{conv_block_forward.2} parent=23 // pred_region
            // Predicated region
            $region29: #{conv_block_forward.2} parent=27 // pred_check
              _
            $region30: #{conv_block_forward.2} parent=27 // pred_check_branch
              %252 = sbr.rel target = $region32
            $region31: #{conv_block_forward.2} parent=27 // pred_region
              // Predicated region
              $region44: #{conv_block_forward.2} parent=31 // pred_check
                _
              $region45: #{conv_block_forward.2} parent=31 // pred_check_branch
                %278 = sbr.rel (0) target = $region47
              $region46: #{conv_block_forward.2} parent=31 // pred_region
                loop: start=0, step=1, limit=1
                $region48: #{conv_block_forward.2} parent=46 // loop_pre_header
                  _
                $region49: #{conv_block_forward.2} parent=46 // loop_header
                  %s280 = sphi 0, %s284
                  %p281 = scmp.ge.s32.totalorder %s280, 1
                  %s285 = sphi %s248, %s248
                  %s286 = sphi %s243, %s243
                $region50: #{conv_block_forward.2} parent=46 // loop_header_branch
                  %283 = sbr.rel (%p281) target = $region54
                $region51: #{conv_block_forward.2} parent=46 // loop_body
                  _
                $region52: #{conv_block_forward.2} parent=46 // loop_footer
                  %s284 = sadd.s32 1, %s280
                $region53: #{conv_block_forward.2} parent=46 // loop_footer_branch
                  %279 = sbr.rel target = $region49
                $region54: #{conv_block_forward.2} parent=46 // loop_exit
                  _
                %s288 = ssub.s32 16, 1
                loop: start=0, step=1, limit=1
                $region55: #{conv_block_forward.2} parent=46 // loop_pre_header
                  _
                $region56: #{conv_block_forward.2} parent=46 // loop_header
                  %s290 = sphi 0, %s294
                  %p291 = scmp.ge.s32.totalorder %s290, 1
                  %s295 = sphi %s248, %s248
                  %s296 = sphi %s243, %s243
                $region57: #{conv_block_forward.2} parent=46 // loop_header_branch
                  %293 = sbr.rel (%p291) target = $region61
                $region58: #{conv_block_forward.2} parent=46 // loop_body
                  %v297 = vld [vmem:[%s295] sm:%s288]
                  %298 = vst [vmem:[%s296] sm:%s288] %v297
                  %v299 = vld [vmem:[%s295 + $0x4] sm:%s288]
                  %300 = vst [vmem:[%s296 + $0x4] sm:%s288] %v299
                  %v301 = vld [vmem:[%s295 + $0x8] sm:%s288]
                  %302 = vst [vmem:[%s296 + $0x8] sm:%s288] %v301
                  %v303 = vld [vmem:[%s295 + $0xd8] sm:%s288]
                  %304 = vst [vmem:[%s296 + $0xc] sm:%s288] %v303
                  %v305 = vld [vmem:[%s295 + $0xdc] sm:%s288]
                  %306 = vst [vmem:[%s296 + $0x10] sm:%s288] %v305
                  %v307 = vld [vmem:[%s295 + $0xe0] sm:%s288]
                  %308 = vst [vmem:[%s296 + $0x14] sm:%s288] %v307
                $region59: #{conv_block_forward.2} parent=46 // loop_footer
                  %s294 = sadd.s32 1, %s290
                $region60: #{conv_block_forward.2} parent=46 // loop_footer_branch
                  %289 = sbr.rel target = $region56
                $region61: #{conv_block_forward.2} parent=46 // loop_exit
                  _
              $region47: #{conv_block_forward.2} parent=31 // pred_fallthru
                _
            $region32: #{conv_block_forward.2} parent=27 // pred_fallthru
              _
            // Predicated region
            $region33: #{conv_block_forward.2} parent=27 // pred_check
              _
            $region34: #{conv_block_forward.2} parent=27 // pred_check_branch
              %254 = sbr.rel (0) target = $region36
            $region35: #{conv_block_forward.2} parent=27 // pred_region
              %s256 = ssub.s32 16, 1
              loop: start=0, step=1, limit=1
              $region37: #{conv_block_forward.2} parent=35 // loop_pre_header
                _
              $region38: #{conv_block_forward.2} parent=35 // loop_header
                %s258 = sphi 0, %s262
                %p259 = scmp.ge.s32.totalorder %s258, 1
                %s263 = sphi %s248, %s248
                %s264 = sphi %s243, %s243
              $region39: #{conv_block_forward.2} parent=35 // loop_header_branch
                %261 = sbr.rel (%p259) target = $region43
              $region40: #{conv_block_forward.2} parent=35 // loop_body
                %v265 = vld [vmem:[%s263] sm:%s256]
                %266 = vst [vmem:[%s264] sm:%s256] %v265
                %v267 = vld [vmem:[%s263 + $0x4] sm:%s256]
                %268 = vst [vmem:[%s264 + $0x4] sm:%s256] %v267
                %v269 = vld [vmem:[%s263 + $0x8] sm:%s256]
                %270 = vst [vmem:[%s264 + $0x8] sm:%s256] %v269
                %v271 = vld [vmem:[%s263 + $0xd8] sm:%s256]
                %272 = vst [vmem:[%s264 + $0xc] sm:%s256] %v271
                %v273 = vld [vmem:[%s263 + $0xdc] sm:%s256]
                %274 = vst [vmem:[%s264 + $0x10] sm:%s256] %v273
                %v275 = vld [vmem:[%s263 + $0xe0] sm:%s256]
                %276 = vst [vmem:[%s264 + $0x14] sm:%s256] %v275
              $region41: #{conv_block_forward.2} parent=35 // loop_footer
                %s262 = sadd.s32 1, %s258
              $region42: #{conv_block_forward.2} parent=35 // loop_footer_branch
                %257 = sbr.rel target = $region38
              $region43: #{conv_block_forward.2} parent=35 // loop_exit
                _
            $region36: #{conv_block_forward.2} parent=27 // pred_fallthru
              _
          $region28: #{conv_block_forward.2} parent=23 // pred_fallthru
            _
          %309 = vnop
        $region24: #{conv_block_forward.2} parent=19 // pred_fallthru
          _
        // Predicated region
        $region62: #{conv_block_forward.2} parent=19 // pred_check
          %p310 = pneg %p87
        $region63: #{conv_block_forward.2} parent=19 // pred_check_branch
          %312 = sbr.rel (%p310) target = $region65
        $region64: #{conv_block_forward.2} parent=19 // pred_region
          %s313 = sand.u32 %s77, 1
          %s314 = sand.u32 %s77, 1
          %s315 = smul.addr %s314, 24
          %s316 = scalar_lea.vmem [#allocation4], %s315
          %s317 = smul.u32 %s19, 8
          %s318 = sadd.s32 %s317, %s21
          %s319 = sadd.s32 %s318, 1
          %s320 = smul.addr %s319, 3
          %s321 = smul.addr %s320, 4
          %s322 = scalar_lea.vmem %s1, %s321
          // Predicated region
          $region66: #{conv_block_forward.2} parent=64 // pred_check
            _
          $region67: #{conv_block_forward.2} parent=64 // pred_check_branch
            %324 = sbr.rel (0) target = $region69
          $region68: #{conv_block_forward.2} parent=64 // pred_region
            // Predicated region
            $region70: #{conv_block_forward.2} parent=68 // pred_check
              _
            $region71: #{conv_block_forward.2} parent=68 // pred_check_branch
              %326 = sbr.rel target = $region73
            $region72: #{conv_block_forward.2} parent=68 // pred_region
              // Predicated region
              $region85: #{conv_block_forward.2} parent=72 // pred_check
                _
              $region86: #{conv_block_forward.2} parent=72 // pred_check_branch
                %352 = sbr.rel (0) target = $region88
              $region87: #{conv_block_forward.2} parent=72 // pred_region
                loop: start=0, step=1, limit=1
                $region89: #{conv_block_forward.2} parent=87 // loop_pre_header
                  _
                $region90: #{conv_block_forward.2} parent=87 // loop_header
                  %s354 = sphi 0, %s358
                  %p355 = scmp.ge.s32.totalorder %s354, 1
                  %s359 = sphi %s322, %s322
                  %s360 = sphi %s316, %s316
                $region91: #{conv_block_forward.2} parent=87 // loop_header_branch
                  %357 = sbr.rel (%p355) target = $region95
                $region92: #{conv_block_forward.2} parent=87 // loop_body
                  _
                $region93: #{conv_block_forward.2} parent=87 // loop_footer
                  %s358 = sadd.s32 1, %s354
                $region94: #{conv_block_forward.2} parent=87 // loop_footer_branch
                  %353 = sbr.rel target = $region90
                $region95: #{conv_block_forward.2} parent=87 // loop_exit
                  _
                %s362 = ssub.s32 16, 1
                loop: start=0, step=1, limit=1
                $region96: #{conv_block_forward.2} parent=87 // loop_pre_header
                  _
                $region97: #{conv_block_forward.2} parent=87 // loop_header
                  %s364 = sphi 0, %s368
                  %p365 = scmp.ge.s32.totalorder %s364, 1
                  %s369 = sphi %s322, %s322
                  %s370 = sphi %s316, %s316
                $region98: #{conv_block_forward.2} parent=87 // loop_header_branch
                  %367 = sbr.rel (%p365) target = $region102
                $region99: #{conv_block_forward.2} parent=87 // loop_body
                  %v371 = vld [vmem:[%s369] sm:%s362]
                  %372 = vst [vmem:[%s370] sm:%s362] %v371
                  %v373 = vld [vmem:[%s369 + $0x4] sm:%s362]
                  %374 = vst [vmem:[%s370 + $0x4] sm:%s362] %v373
                  %v375 = vld [vmem:[%s369 + $0x8] sm:%s362]
                  %376 = vst [vmem:[%s370 + $0x8] sm:%s362] %v375
                  %v377 = vld [vmem:[%s369 + $0xd8] sm:%s362]
                  %378 = vst [vmem:[%s370 + $0xc] sm:%s362] %v377
                  %v379 = vld [vmem:[%s369 + $0xdc] sm:%s362]
                  %380 = vst [vmem:[%s370 + $0x10] sm:%s362] %v379
                  %v381 = vld [vmem:[%s369 + $0xe0] sm:%s362]
                  %382 = vst [vmem:[%s370 + $0x14] sm:%s362] %v381
                $region100: #{conv_block_forward.2} parent=87 // loop_footer
                  %s368 = sadd.s32 1, %s364
                $region101: #{conv_block_forward.2} parent=87 // loop_footer_branch
                  %363 = sbr.rel target = $region97
                $region102: #{conv_block_forward.2} parent=87 // loop_exit
                  _
              $region88: #{conv_block_forward.2} parent=72 // pred_fallthru
                _
            $region73: #{conv_block_forward.2} parent=68 // pred_fallthru
              _
            // Predicated region
            $region74: #{conv_block_forward.2} parent=68 // pred_check
              _
            $region75: #{conv_block_forward.2} parent=68 // pred_check_branch
              %328 = sbr.rel (0) target = $region77
            $region76: #{conv_block_forward.2} parent=68 // pred_region
              %s330 = ssub.s32 16, 1
              loop: start=0, step=1, limit=1
              $region78: #{conv_block_forward.2} parent=76 // loop_pre_header
                _
              $region79: #{conv_block_forward.2} parent=76 // loop_header
                %s332 = sphi 0, %s336
                %p333 = scmp.ge.s32.totalorder %s332, 1
                %s337 = sphi %s322, %s322
                %s338 = sphi %s316, %s316
              $region80: #{conv_block_forward.2} parent=76 // loop_header_branch
                %335 = sbr.rel (%p333) target = $region84
              $region81: #{conv_block_forward.2} parent=76 // loop_body
                %v339 = vld [vmem:[%s337] sm:%s330]
                %340 = vst [vmem:[%s338] sm:%s330] %v339
                %v341 = vld [vmem:[%s337 + $0x4] sm:%s330]
                %342 = vst [vmem:[%s338 + $0x4] sm:%s330] %v341
                %v343 = vld [vmem:[%s337 + $0x8] sm:%s330]
                %344 = vst [vmem:[%s338 + $0x8] sm:%s330] %v343
                %v345 = vld [vmem:[%s337 + $0xd8] sm:%s330]
                %346 = vst [vmem:[%s338 + $0xc] sm:%s330] %v345
                %v347 = vld [vmem:[%s337 + $0xdc] sm:%s330]
                %348 = vst [vmem:[%s338 + $0x10] sm:%s330] %v347
                %v349 = vld [vmem:[%s337 + $0xe0] sm:%s330]
                %350 = vst [vmem:[%s338 + $0x14] sm:%s330] %v349
              $region82: #{conv_block_forward.2} parent=76 // loop_footer
                %s336 = sadd.s32 1, %s332
              $region83: #{conv_block_forward.2} parent=76 // loop_footer_branch
                %331 = sbr.rel target = $region79
              $region84: #{conv_block_forward.2} parent=76 // loop_exit
                _
            $region77: #{conv_block_forward.2} parent=68 // pred_fallthru
              _
          $region69: #{conv_block_forward.2} parent=64 // pred_fallthru
            _
          %383 = vnop
        $region65: #{conv_block_forward.2} parent=19 // pred_fallthru
          _
        // Predicated region
        $region103: #{conv_block_forward.2} parent=19 // pred_check
          %p384 = pneg %p119
        $region104: #{conv_block_forward.2} parent=19 // pred_check_branch
          %386 = sbr.rel (%p384) target = $region106
        $region105: #{conv_block_forward.2} parent=19 // pred_region
          %s387 = sand.u32 %s109, 1
          %s388 = sand.u32 %s109, 1
          %s389 = smul.addr %s388, 24
          %s390 = scalar_lea.vmem [#allocation5], %s389
          %s391 = smul.u32 %s19, 8
          %s392 = sadd.s32 %s391, %s21
          %s393 = sadd.s32 %s392, 2
          %s394 = smul.addr %s393, 3
          %s395 = smul.addr %s394, 4
          %s396 = scalar_lea.vmem %s2, %s395
          // Predicated region
          $region107: #{conv_block_forward.2} parent=105 // pred_check
            _
          $region108: #{conv_block_forward.2} parent=105 // pred_check_branch
            %398 = sbr.rel (0) target = $region110
          $region109: #{conv_block_forward.2} parent=105 // pred_region
            // Predicated region
            $region111: #{conv_block_forward.2} parent=109 // pred_check
              _
            $region112: #{conv_block_forward.2} parent=109 // pred_check_branch
              %400 = sbr.rel target = $region114
            $region113: #{conv_block_forward.2} parent=109 // pred_region
              // Predicated region
              $region126: #{conv_block_forward.2} parent=113 // pred_check
                _
              $region127: #{conv_block_forward.2} parent=113 // pred_check_branch
                %426 = sbr.rel (0) target = $region129
              $region128: #{conv_block_forward.2} parent=113 // pred_region
                loop: start=0, step=1, limit=1
                $region130: #{conv_block_forward.2} parent=128 // loop_pre_header
                  _
                $region131: #{conv_block_forward.2} parent=128 // loop_header
                  %s428 = sphi 0, %s432
                  %p429 = scmp.ge.s32.totalorder %s428, 1
                  %s433 = sphi %s396, %s396
                  %s434 = sphi %s390, %s390
                $region132: #{conv_block_forward.2} parent=128 // loop_header_branch
                  %431 = sbr.rel (%p429) target = $region136
                $region133: #{conv_block_forward.2} parent=128 // loop_body
                  _
                $region134: #{conv_block_forward.2} parent=128 // loop_footer
                  %s432 = sadd.s32 1, %s428
                $region135: #{conv_block_forward.2} parent=128 // loop_footer_branch
                  %427 = sbr.rel target = $region131
                $region136: #{conv_block_forward.2} parent=128 // loop_exit
                  _
                %s436 = ssub.s32 16, 1
                loop: start=0, step=1, limit=1
                $region137: #{conv_block_forward.2} parent=128 // loop_pre_header
                  _
                $region138: #{conv_block_forward.2} parent=128 // loop_header
                  %s438 = sphi 0, %s442
                  %p439 = scmp.ge.s32.totalorder %s438, 1
                  %s443 = sphi %s396, %s396
                  %s444 = sphi %s390, %s390
                $region139: #{conv_block_forward.2} parent=128 // loop_header_branch
                  %441 = sbr.rel (%p439) target = $region143
                $region140: #{conv_block_forward.2} parent=128 // loop_body
                  %v445 = vld [vmem:[%s443] sm:%s436]
                  %446 = vst [vmem:[%s444] sm:%s436] %v445
                  %v447 = vld [vmem:[%s443 + $0x4] sm:%s436]
                  %448 = vst [vmem:[%s444 + $0x4] sm:%s436] %v447
                  %v449 = vld [vmem:[%s443 + $0x8] sm:%s436]
                  %450 = vst [vmem:[%s444 + $0x8] sm:%s436] %v449
                  %v451 = vld [vmem:[%s443 + $0xd8] sm:%s436]
                  %452 = vst [vmem:[%s444 + $0xc] sm:%s436] %v451
                  %v453 = vld [vmem:[%s443 + $0xdc] sm:%s436]
                  %454 = vst [vmem:[%s444 + $0x10] sm:%s436] %v453
                  %v455 = vld [vmem:[%s443 + $0xe0] sm:%s436]
                  %456 = vst [vmem:[%s444 + $0x14] sm:%s436] %v455
                $region141: #{conv_block_forward.2} parent=128 // loop_footer
                  %s442 = sadd.s32 1, %s438
                $region142: #{conv_block_forward.2} parent=128 // loop_footer_branch
                  %437 = sbr.rel target = $region138
                $region143: #{conv_block_forward.2} parent=128 // loop_exit
                  _
              $region129: #{conv_block_forward.2} parent=113 // pred_fallthru
                _
            $region114: #{conv_block_forward.2} parent=109 // pred_fallthru
              _
            // Predicated region
            $region115: #{conv_block_forward.2} parent=109 // pred_check
              _
            $region116: #{conv_block_forward.2} parent=109 // pred_check_branch
              %402 = sbr.rel (0) target = $region118
            $region117: #{conv_block_forward.2} parent=109 // pred_region
              %s404 = ssub.s32 16, 1
              loop: start=0, step=1, limit=1
              $region119: #{conv_block_forward.2} parent=117 // loop_pre_header
                _
              $region120: #{conv_block_forward.2} parent=117 // loop_header
                %s406 = sphi 0, %s410
                %p407 = scmp.ge.s32.totalorder %s406, 1
                %s411 = sphi %s396, %s396
                %s412 = sphi %s390, %s390
              $region121: #{conv_block_forward.2} parent=117 // loop_header_branch
                %409 = sbr.rel (%p407) target = $region125
              $region122: #{conv_block_forward.2} parent=117 // loop_body
                %v413 = vld [vmem:[%s411] sm:%s404]
                %414 = vst [vmem:[%s412] sm:%s404] %v413
                %v415 = vld [vmem:[%s411 + $0x4] sm:%s404]
                %416 = vst [vmem:[%s412 + $0x4] sm:%s404] %v415
                %v417 = vld [vmem:[%s411 + $0x8] sm:%s404]
                %418 = vst [vmem:[%s412 + $0x8] sm:%s404] %v417
                %v419 = vld [vmem:[%s411 + $0xd8] sm:%s404]
                %420 = vst [vmem:[%s412 + $0xc] sm:%s404] %v419
                %v421 = vld [vmem:[%s411 + $0xdc] sm:%s404]
                %422 = vst [vmem:[%s412 + $0x10] sm:%s404] %v421
                %v423 = vld [vmem:[%s411 + $0xe0] sm:%s404]
                %424 = vst [vmem:[%s412 + $0x14] sm:%s404] %v423
              $region123: #{conv_block_forward.2} parent=117 // loop_footer
                %s410 = sadd.s32 1, %s406
              $region124: #{conv_block_forward.2} parent=117 // loop_footer_branch
                %405 = sbr.rel target = $region120
              $region125: #{conv_block_forward.2} parent=117 // loop_exit
                _
            $region118: #{conv_block_forward.2} parent=109 // pred_fallthru
              _
          $region110: #{conv_block_forward.2} parent=105 // pred_fallthru
            _
          %457 = vnop
        $region106: #{conv_block_forward.2} parent=19 // pred_fallthru
          _
      $region20: #{conv_block_forward.2} parent=5 // pred_fallthru
        _
      %p458 = scmp.le.s32.totalorder 1, %s12
      %p459 = scmp.lt.s32.totalorder %s12, 17
      %p460 = pnand %p458, %p459
      %p461 = pneg %p460
      // Predicated region
      $region144: #{conv_block_forward.2} parent=5 // pred_check
        _
      $region145: #{conv_block_forward.2} parent=5 // pred_check_branch
        %463 = sbr.rel (%p460) target = $region147
      $region146: #{conv_block_forward.2} parent=5 // pred_region
        %s464 = ssub.s32 %s12, 1
        %s465 = sand.u32 %s48, 1
        %s466 = sand.u32 %s48, 1
        %s467 = smul.addr %s466, 24
        %s468 = scalar_lea.vmem [#allocation3], %s467
        // Predicated region
        $region148: #{conv_block_forward.2} parent=146 // pred_check
          %p469 = pneg %p61
        $region149: #{conv_block_forward.2} parent=146 // pred_check_branch
          %471 = sbr.rel (%p469) target = $region151
        $region150: #{conv_block_forward.2} parent=146 // pred_region
          _
        $region151: #{conv_block_forward.2} parent=146 // pred_fallthru
          _
        %s472 = sand.u32 %s80, 1
        %s473 = sand.u32 %s80, 1
        %s474 = smul.addr %s473, 24
        %s475 = scalar_lea.vmem [#allocation4], %s474
        // Predicated region
        $region152: #{conv_block_forward.2} parent=146 // pred_check
          %p476 = pneg %p93
        $region153: #{conv_block_forward.2} parent=146 // pred_check_branch
          %478 = sbr.rel (%p476) target = $region155
        $region154: #{conv_block_forward.2} parent=146 // pred_region
          _
        $region155: #{conv_block_forward.2} parent=146 // pred_fallthru
          _
        %s479 = sand.u32 %s112, 1
        %s480 = sand.u32 %s112, 1
        %s481 = smul.addr %s480, 24
        %s482 = scalar_lea.vmem [#allocation5], %s481
        // Predicated region
        $region156: #{conv_block_forward.2} parent=146 // pred_check
          %p483 = pneg %p125
        $region157: #{conv_block_forward.2} parent=146 // pred_check_branch
          %485 = sbr.rel (%p483) target = $region159
        $region158: #{conv_block_forward.2} parent=146 // pred_region
          _
        $region159: #{conv_block_forward.2} parent=146 // pred_fallthru
          _
        %s486 = sand.u32 %s48, 1
        %s487 = sand.u32 %s48, 1
        %s488 = smul.addr %s487, 24
        %s489 = scalar_lea.vmem [#allocation3], %s488
        %p490 = pneg %p61
        %p491 = pneg %p58
        %s492 = sand.u32 %s80, 1
        %s493 = sand.u32 %s80, 1
        %s494 = smul.addr %s493, 24
        %s495 = scalar_lea.vmem [#allocation4], %s494
        %p496 = pneg %p93
        %p497 = pneg %p90
        %s498 = sand.u32 %s112, 1
        %s499 = sand.u32 %s112, 1
        %s500 = smul.addr %s499, 24
        %s501 = scalar_lea.vmem [#allocation5], %s500
        %p502 = pneg %p125
        %p503 = pneg %p122
        %p504 = scmp.lt.s32.totalorder %s23, 0
        %s505 = scalar_select %p504, %s23, 0
        %s506 = smul.addr %s505, 2
        %s507 = scalar_lea.vmem %s3, %s506
        %p508 = pneg %p151
        %p509 = pneg %p148
        %p510 = pneg %p183
        %p511 = pneg %p180
        %s512 = sand.u32 %s170, 1
        %s513 = sand.u32 %s170, 1
        %s514 = smul.addr %s513, 32
        %s515 = scalar_lea.vmem [#allocation6], %s514
        %p516 = pneg %p211
        %p517 = pneg %p208
        %p518 = scmp.lt.s32.totalorder %s22, 1
        %s519 = scalar_select %p518, %s22, 1
        %p520 = scmp.lt.s32.totalorder %s23, 0
        %s521 = scalar_select %p520, %s23, 0
        %s522 = sadd.s32 %s521, %s519
        %s523 = smul.addr %s522, 2
        %s524 = scalar_lea.vmem %s5, %s523
        %s525 = smul.u32 %s22, 8
        %s526 = sadd.s32 %s525, %s24
        %s527 = smul.u32 %s22, 8
        %s528 = sadd.s32 %s527, %s24
        %s529 = sadd.s32 %s528, 1
        %s530 = smul.u32 %s22, 8
        %s531 = sadd.s32 %s530, %s24
        %s532 = sadd.s32 %s531, 2
        %p533 = scmp.lt.s32.totalorder %s23, 0
        %s534 = scalar_select %p533, %s23, 0
        %s535 = smul.addr %s534, 2
        %s536 = scalar_lea.vmem %s3, %s535
        %s537 = smul.u32 %s22, 8
        %s538 = sadd.s32 %s537, %s24
        %p539 = scmp.lt.s32.totalorder %s22, 1
        %s540 = scalar_select %p539, %s22, 1
        %p541 = scmp.lt.s32.totalorder %s23, 0
        %s542 = scalar_select %p541, %s23, 0
        %s543 = sadd.s32 %s542, %s540
        %s544 = smul.addr %s543, 2
        %s545 = scalar_lea.vmem %s5, %s544
        %p547 = scmp.eq.s32.totalorder %s24, 0
        // Predicated region
        $region160: #{conv_block_forward.2} parent=146 // pred_check
          %p548 = pneg %p547
        $region161: #{conv_block_forward.2} parent=146 // pred_check_branch
          %550 = sbr.rel (%p548) target = $region163
        $region162: #{conv_block_forward.2} parent=146 // pred_region
          %551 = vst [vmem:[#allocation2] sm:$0x3] 0.0
        $region163: #{conv_block_forward.2} parent=146 // pred_fallthru
          _
        %v552 = vld [vmem:[%s468] sm:$0xf]
        %v553 = vld [vmem:[%s468 + $0x4] sm:$0xf]
        %v554 = vld [vmem:[%s468 + $0x8] sm:$0x1]
        %v555 = vld [vmem:[%s468 + $0xc] sm:$0xf]
        %v556 = vld [vmem:[%s468 + $0x10] sm:$0xf]
        %v557 = vld [vmem:[%s468 + $0x14] sm:$0x1]
        %v558 = vld [vmem:[%s536] sm:$0x3]
        %vm559 = vsmask.f32 3328
        %vm560 = vsmask.f32 7440
        %vm561 = vmor %vm559, %vm560
        %v563 = vshrl.u32 %v552, 16
        %v565 = vrot.slane %v563, 4
        %v566 = vshll.u32 %v552, 16
        %v568 = vrot.slane %v566, 5
        %v569 = vor.u32 %v565, %v568
        %v570 = vrot.slane %v569, 4
        %v572 = vshll.u32 %v553, 16
        %v574 = vrot.slane %v572, 5
        %v575 = vsel %vm561, %v570, %v574
        %v576 = vshrl.u32 %v553, 16
        %v578 = vrot.slane %v576, 4
        %v579 = vor.u32 %v578, %v574
        %v580 = vrot.slane %v579, 4
        %v582 = vshll.u32 %v554, 16
        %v584 = vrot.slane %v582, 5
        %v585 = vsel %vm561, %v580, %v584
        %v587 = vshrl.u32 %v555, 16
        %v589 = vrot.slane %v587, 4
        %v590 = vshll.u32 %v555, 16
        %v592 = vrot.slane %v590, 5
        %v593 = vor.u32 %v589, %v592
        %v594 = vrot.slane %v593, 4
        %v596 = vshll.u32 %v556, 16
        %v598 = vrot.slane %v596, 5
        %v599 = vsel %vm561, %v594, %v598
        %v600 = vshrl.u32 %v556, 16
        %v602 = vrot.slane %v600, 4
        %v603 = vor.u32 %v602, %v598
        %v604 = vrot.slane %v603, 4
        %v606 = vshll.u32 %v557, 16
        %v608 = vrot.slane %v606, 5
        %v609 = vsel %vm561, %v604, %v608
        %s610 = scalar_lea.vmem %s536, 2
        %v611 = vld [vmem:[%s610] sm:$0x3]
        %v612 = vunpack.c.l.b16 %v575
        %v613 = vunpack.c.l.b16 %v585
        %v614 = vunpack.c.l.b16 %v599
        %v615 = vunpack.c.l.b16 %v609
        %v616 = vpack.c.b16 %v613, %v612
        %v617 = vpack.c.b16 %v615, %v614
        %vm618 = vcmask 31744
        %v620 = vsel %vm618, %v616, 0
        %v623 = vsel %vm618, %v617, 0
        %vm625 = vcmask 1041408
        %v627 = vsel %vm625, %v611, 0
        %629 = vmatprep.subr.bf16.mxu0 0
        %630 = vmatpush1.bf16.msra.mxu0 0
        %631 = vmatprep.subr.bf16.mxu0 0
        %632 = vmatpush1.bf16.msra.mxu0 0
        %633 = vmatprep.subr.bf16.mxu0 0
        %634 = vmatpush1.bf16.msra.mxu0 0
        %635 = vmatprep.subr.bf16.mxu0 0
        %636 = vmatpush1.bf16.msra.mxu0 0
        %637 = vmatprep.subr.bf16.mxu0 0
        %638 = vmatpush1.bf16.msra.mxu0 0
        %639 = vmatprep.subr.bf16.mxu0 0
        %640 = vmatpush1.bf16.msra.mxu0 0
        %641 = vmatprep.subr.bf16.mxu0 0
        %642 = vmatpush1.bf16.msra.mxu0 0
        %643 = vmatprep.subr.bf16.mxu0 0
        %644 = vmatpush1.bf16.msra.mxu0 %v627
        %645 = vmatprep.subr.bf16.mxu0 0
        %646 = vmatpush2.bf16.msra.mxu0 0
        %647 = vmatprep.subr.bf16.mxu0 0
        %648 = vmatpush2.bf16.msra.mxu0 0
        %649 = vmatprep.subr.bf16.mxu0 0
        %650 = vmatpush2.bf16.msra.mxu0 0
        %651 = vmatprep.subr.bf16.mxu0 0
        %652 = vmatpush2.bf16.msra.mxu0 0
        %653 = vmatprep.subr.bf16.mxu0 0
        %654 = vmatpush2.bf16.msra.mxu0 0
        %655 = vmatprep.subr.bf16.mxu0 0
        %656 = vmatpush2.bf16.msra.mxu0 0
        %657 = vmatprep.subr.bf16.mxu0 0
        %658 = vmatpush2.bf16.msra.mxu0 0
        %659 = vmatprep.subr.bf16.mxu0 0
        %660 = vmatpush2.bf16.msra.mxu0 0
        %661 = vmatprep.mubr.bf16.mxu0 0
        %662 = vmatmul.mubr.bf16.gmra.mxu0 %v620
        %v663 = vpop.f32.mrf.mxu0
        %v664 = vadd.f32 0.0, %v663
        %v665 = vpop.f32.mrf.mxu0
        %v666 = vpop.f32.mrf.mxu0
        %v667 = vadd.f32 0.0, %v666
        %v668 = vpop.f32.mrf.mxu0
        %669 = vmatprep.mubr.bf16.mxu0 0
        %670 = vmatmul.mubr.bf16.gmra.mxu0 %v623
        %v671 = vpop.f32.mrf.mxu0
        %v672 = vadd.f32 0.0, %v671
        %v673 = vpop.f32.mrf.mxu0
        %v674 = vpop.f32.mrf.mxu0
        %v675 = vadd.f32 0.0, %v674
        %v676 = vpop.f32.mrf.mxu0
        %677 = vdwg.mxu0
        %v682 = vunpack.c.l.b16 %v552
        %v683 = vunpack.c.l.b16 %v553
        %v684 = vunpack.c.l.b16 %v555
        %v685 = vunpack.c.l.b16 %v556
        %v686 = vpack.c.b16 %v683, %v682
        %v687 = vpack.c.b16 %v685, %v684
        %v689 = vsel %vm618, %v686, 0
        %v692 = vsel %vm618, %v687, 0
        %v695 = vsel %vm625, %v558, 0
        %697 = vmatprep.subr.bf16.mxu0 0
        %698 = vmatpush1.bf16.msra.mxu0 0
        %699 = vmatprep.subr.bf16.mxu0 0
        %700 = vmatpush1.bf16.msra.mxu0 0
        %701 = vmatprep.subr.bf16.mxu0 0
        %702 = vmatpush1.bf16.msra.mxu0 0
        %703 = vmatprep.subr.bf16.mxu0 0
        %704 = vmatpush1.bf16.msra.mxu0 0
        %705 = vmatprep.subr.bf16.mxu0 0
        %706 = vmatpush1.bf16.msra.mxu0 0
        %707 = vmatprep.subr.bf16.mxu0 0
        %708 = vmatpush1.bf16.msra.mxu0 0
        %709 = vmatprep.subr.bf16.mxu0 0
        %710 = vmatpush1.bf16.msra.mxu0 0
        %711 = vmatprep.subr.bf16.mxu0 0
        %712 = vmatpush1.bf16.msra.mxu0 %v695
        %713 = vmatprep.subr.bf16.mxu0 0
        %714 = vmatpush2.bf16.msra.mxu0 0
        %715 = vmatprep.subr.bf16.mxu0 0
        %716 = vmatpush2.bf16.msra.mxu0 0
        %717 = vmatprep.subr.bf16.mxu0 0
        %718 = vmatpush2.bf16.msra.mxu0 0
        %719 = vmatprep.subr.bf16.mxu0 0
        %720 = vmatpush2.bf16.msra.mxu0 0
        %721 = vmatprep.subr.bf16.mxu0 0
        %722 = vmatpush2.bf16.msra.mxu0 0
        %723 = vmatprep.subr.bf16.mxu0 0
        %724 = vmatpush2.bf16.msra.mxu0 0
        %725 = vmatprep.subr.bf16.mxu0 0
        %726 = vmatpush2.bf16.msra.mxu0 0
        %727 = vmatprep.subr.bf16.mxu0 0
        %728 = vmatpush2.bf16.msra.mxu0 0
        %729 = vmatprep.mubr.bf16.mxu0 0
        %730 = vmatmul.mubr.bf16.gmra.mxu0 %v689
        %v731 = vpop.f32.mrf.mxu0
        %v732 = vadd.f32 %v664, %v731
        %v733 = vpop.f32.mrf.mxu0
        %v734 = vpop.f32.mrf.mxu0
        %v735 = vadd.f32 %v667, %v734
        %v736 = vpop.f32.mrf.mxu0
        %737 = vmatprep.mubr.bf16.mxu0 0
        %738 = vmatmul.mubr.bf16.gmra.mxu0 %v692
        %v739 = vpop.f32.mrf.mxu0
        %v740 = vadd.f32 %v672, %v739
        %v741 = vpop.f32.mrf.mxu0
        %v742 = vpop.f32.mrf.mxu0
        %v743 = vadd.f32 %v675, %v742
        %v744 = vpop.f32.mrf.mxu0
        %745 = vdwg.mxu0
        %vm748 = vcmask 1042432
        %vm749 = vcmask 1046532
        %vm750 = vmor %vm748, %vm749
        %v751 = vrot.slane %v552, 5
        %v752 = vrot.slane %v751, 4
        %v753 = vrot.slane %v553, 5
        %v754 = vsel %vm750, %v752, %v753
        %v755 = vrot.slane %v753, 4
        %v756 = vrot.slane %v554, 5
        %v757 = vsel %vm750, %v755, %v756
        %v758 = vrot.slane %v555, 5
        %v759 = vrot.slane %v758, 4
        %v760 = vrot.slane %v556, 5
        %v761 = vsel %vm750, %v759, %v760
        %v762 = vrot.slane %v760, 4
        %v763 = vrot.slane %v557, 5
        %v764 = vsel %vm750, %v762, %v763
        %s765 = scalar_lea.vmem %s536, 4
        %v766 = vld [vmem:[%s765] sm:$0x3]
        %v767 = vunpack.c.l.b16 %v754
        %v768 = vunpack.c.l.b16 %v757
        %v769 = vunpack.c.l.b16 %v761
        %v770 = vunpack.c.l.b16 %v764
        %v771 = vpack.c.b16 %v768, %v767
        %v772 = vpack.c.b16 %v770, %v769
        %v774 = vsel %vm618, %v771, 0
        %v777 = vsel %vm618, %v772, 0
        %v780 = vsel %vm625, %v766, 0
        %782 = vmatprep.subr.bf16.mxu0 0
        %783 = vmatpush1.bf16.msra.mxu0 0
        %784 = vmatprep.subr.bf16.mxu0 0
        %785 = vmatpush1.bf16.msra.mxu0 0
        %786 = vmatprep.subr.bf16.mxu0 0
        %787 = vmatpush1.bf16.msra.mxu0 0
        %788 = vmatprep.subr.bf16.mxu0 0
        %789 = vmatpush1.bf16.msra.mxu0 0
        %790 = vmatprep.subr.bf16.mxu0 0
        %791 = vmatpush1.bf16.msra.mxu0 0
        %792 = vmatprep.subr.bf16.mxu0 0
        %793 = vmatpush1.bf16.msra.mxu0 0
        %794 = vmatprep.subr.bf16.mxu0 0
        %795 = vmatpush1.bf16.msra.mxu0 0
        %796 = vmatprep.subr.bf16.mxu0 0
        %797 = vmatpush1.bf16.msra.mxu0 %v780
        %798 = vmatprep.subr.bf16.mxu0 0
        %799 = vmatpush2.bf16.msra.mxu0 0
        %800 = vmatprep.subr.bf16.mxu0 0
        %801 = vmatpush2.bf16.msra.mxu0 0
        %802 = vmatprep.subr.bf16.mxu0 0
        %803 = vmatpush2.bf16.msra.mxu0 0
        %804 = vmatprep.subr.bf16.mxu0 0
        %805 = vmatpush2.bf16.msra.mxu0 0
        %806 = vmatprep.subr.bf16.mxu0 0
        %807 = vmatpush2.bf16.msra.mxu0 0
        %808 = vmatprep.subr.bf16.mxu0 0
        %809 = vmatpush2.bf16.msra.mxu0 0
        %810 = vmatprep.subr.bf16.mxu0 0
        %811 = vmatpush2.bf16.msra.mxu0 0
        %812 = vmatprep.subr.bf16.mxu0 0
        %813 = vmatpush2.bf16.msra.mxu0 0
        %814 = vmatprep.mubr.bf16.mxu0 0
        %815 = vmatmul.mubr.bf16.gmra.mxu0 %v774
        %v816 = vpop.f32.mrf.mxu0
        %v817 = vadd.f32 0.0, %v816
        %v818 = vpop.f32.mrf.mxu0
        %v819 = vpop.f32.mrf.mxu0
        %v820 = vadd.f32 0.0, %v819
        %v821 = vpop.f32.mrf.mxu0
        %822 = vmatprep.mubr.bf16.mxu0 0
        %823 = vmatmul.mubr.bf16.gmra.mxu0 %v777
        %v824 = vpop.f32.mrf.mxu0
        %v825 = vadd.f32 0.0, %v824
        %v826 = vpop.f32.mrf.mxu0
        %v827 = vpop.f32.mrf.mxu0
        %v828 = vadd.f32 0.0, %v827
        %v829 = vpop.f32.mrf.mxu0
        %830 = vdwg.mxu0
        %v831 = vadd.f32 %v732, %v817
        %v832 = vadd.f32 %v735, %v820
        %v833 = vadd.f32 %v740, %v825
        %v834 = vadd.f32 %v743, %v828
        %v835 = vld [vmem:[%s475] sm:$0xf]
        %v836 = vld [vmem:[%s475 + $0x4] sm:$0xf]
        %v837 = vld [vmem:[%s475 + $0x8] sm:$0x1]
        %v838 = vld [vmem:[%s475 + $0xc] sm:$0xf]
        %v839 = vld [vmem:[%s475 + $0x10] sm:$0xf]
        %v840 = vld [vmem:[%s475 + $0x14] sm:$0x1]
        %s841 = scalar_lea.vmem %s536, 6
        %v842 = vld [vmem:[%s841] sm:$0x3]
        %v847 = vunpack.c.l.b16 %v835
        %v848 = vunpack.c.l.b16 %v836
        %v849 = vunpack.c.l.b16 %v838
        %v850 = vunpack.c.l.b16 %v839
        %v851 = vpack.c.b16 %v848, %v847
        %v852 = vpack.c.b16 %v850, %v849
        %v854 = vsel %vm618, %v851, 0
        %v857 = vsel %vm618, %v852, 0
        %v860 = vsel %vm625, %v842, 0
        %862 = vmatprep.subr.bf16.mxu0 0
        %863 = vmatpush1.bf16.msra.mxu0 0
        %864 = vmatprep.subr.bf16.mxu0 0
        %865 = vmatpush1.bf16.msra.mxu0 0
        %866 = vmatprep.subr.bf16.mxu0 0
        %867 = vmatpush1.bf16.msra.mxu0 0
        %868 = vmatprep.subr.bf16.mxu0 0
        %869 = vmatpush1.bf16.msra.mxu0 0
        %870 = vmatprep.subr.bf16.mxu0 0
        %871 = vmatpush1.bf16.msra.mxu0 0
        %872 = vmatprep.subr.bf16.mxu0 0
        %873 = vmatpush1.bf16.msra.mxu0 0
        %874 = vmatprep.subr.bf16.mxu0 0
        %875 = vmatpush1.bf16.msra.mxu0 0
        %876 = vmatprep.subr.bf16.mxu0 0
        %877 = vmatpush1.bf16.msra.mxu0 %v860
        %878 = vmatprep.subr.bf16.mxu0 0
        %879 = vmatpush2.bf16.msra.mxu0 0
        %880 = vmatprep.subr.bf16.mxu0 0
        %881 = vmatpush2.bf16.msra.mxu0 0
        %882 = vmatprep.subr.bf16.mxu0 0
        %883 = vmatpush2.bf16.msra.mxu0 0
        %884 = vmatprep.subr.bf16.mxu0 0
        %885 = vmatpush2.bf16.msra.mxu0 0
        %886 = vmatprep.subr.bf16.mxu0 0
        %887 = vmatpush2.bf16.msra.mxu0 0
        %888 = vmatprep.subr.bf16.mxu0 0
        %889 = vmatpush2.bf16.msra.mxu0 0
        %890 = vmatprep.subr.bf16.mxu0 0
        %891 = vmatpush2.bf16.msra.mxu0 0
        %892 = vmatprep.subr.bf16.mxu0 0
        %893 = vmatpush2.bf16.msra.mxu0 0
        %894 = vmatprep.mubr.bf16.mxu0 0
        %895 = vmatmul.mubr.bf16.gmra.mxu0 %v854
        %v896 = vpop.f32.mrf.mxu0
        %v897 = vadd.f32 0.0, %v896
        %v898 = vpop.f32.mrf.mxu0
        %v899 = vpop.f32.mrf.mxu0
        %v900 = vadd.f32 0.0, %v899
        %v901 = vpop.f32.mrf.mxu0
        %902 = vmatprep.mubr.bf16.mxu0 0
        %903 = vmatmul.mubr.bf16.gmra.mxu0 %v857
        %v904 = vpop.f32.mrf.mxu0
        %v905 = vadd.f32 0.0, %v904
        %v906 = vpop.f32.mrf.mxu0
        %v907 = vpop.f32.mrf.mxu0
        %v908 = vadd.f32 0.0, %v907
        %v909 = vpop.f32.mrf.mxu0
        %910 = vdwg.mxu0
        %v911 = vadd.f32 %v831, %v897
        %v912 = vadd.f32 %v832, %v900
        %v913 = vadd.f32 %v833, %v905
        %v914 = vadd.f32 %v834, %v908
        %v916 = vshrl.u32 %v835, 16
        %v918 = vrot.slane %v916, 4
        %v919 = vshll.u32 %v835, 16
        %v921 = vrot.slane %v919, 5
        %v922 = vor.u32 %v918, %v921
        %v923 = vrot.slane %v922, 4
        %v925 = vshll.u32 %v836, 16
        %v927 = vrot.slane %v925, 5
        %v928 = vsel %vm561, %v923, %v927
        %v929 = vshrl.u32 %v836, 16
        %v931 = vrot.slane %v929, 4
        %v932 = vor.u32 %v931, %v927
        %v933 = vrot.slane %v932, 4
        %v935 = vshll.u32 %v837, 16
        %v937 = vrot.slane %v935, 5
        %v938 = vsel %vm561, %v933, %v937
        %v940 = vshrl.u32 %v838, 16
        %v942 = vrot.slane %v940, 4
        %v943 = vshll.u32 %v838, 16
        %v945 = vrot.slane %v943, 5
        %v946 = vor.u32 %v942, %v945
        %v947 = vrot.slane %v946, 4
        %v949 = vshll.u32 %v839, 16
        %v951 = vrot.slane %v949, 5
        %v952 = vsel %vm561, %v947, %v951
        %v953 = vshrl.u32 %v839, 16
        %v955 = vrot.slane %v953, 4
        %v956 = vor.u32 %v955, %v951
        %v957 = vrot.slane %v956, 4
        %v959 = vshll.u32 %v840, 16
        %v961 = vrot.slane %v959, 5
        %v962 = vsel %vm561, %v957, %v961
        %s963 = scalar_lea.vmem %s536, 8
        %v964 = vld [vmem:[%s963] sm:$0x3]
        %v965 = vunpack.c.l.b16 %v928
        %v966 = vunpack.c.l.b16 %v938
        %v967 = vunpack.c.l.b16 %v952
        %v968 = vunpack.c.l.b16 %v962
        %v969 = vpack.c.b16 %v966, %v965
        %v970 = vpack.c.b16 %v968, %v967
        %v972 = vsel %vm618, %v969, 0
        %v975 = vsel %vm618, %v970, 0
        %v978 = vsel %vm625, %v964, 0
        %980 = vmatprep.subr.bf16.mxu0 0
        %981 = vmatpush1.bf16.msra.mxu0 0
        %982 = vmatprep.subr.bf16.mxu0 0
        %983 = vmatpush1.bf16.msra.mxu0 0
        %984 = vmatprep.subr.bf16.mxu0 0
        %985 = vmatpush1.bf16.msra.mxu0 0
        %986 = vmatprep.subr.bf16.mxu0 0
        %987 = vmatpush1.bf16.msra.mxu0 0
        %988 = vmatprep.subr.bf16.mxu0 0
        %989 = vmatpush1.bf16.msra.mxu0 0
        %990 = vmatprep.subr.bf16.mxu0 0
        %991 = vmatpush1.bf16.msra.mxu0 0
        %992 = vmatprep.subr.bf16.mxu0 0
        %993 = vmatpush1.bf16.msra.mxu0 0
        %994 = vmatprep.subr.bf16.mxu0 0
        %995 = vmatpush1.bf16.msra.mxu0 %v978
        %996 = vmatprep.subr.bf16.mxu0 0
        %997 = vmatpush2.bf16.msra.mxu0 0
        %998 = vmatprep.subr.bf16.mxu0 0
        %999 = vmatpush2.bf16.msra.mxu0 0
        %1000 = vmatprep.subr.bf16.mxu0 0
        %1001 = vmatpush2.bf16.msra.mxu0 0
        %1002 = vmatprep.subr.bf16.mxu0 0
        %1003 = vmatpush2.bf16.msra.mxu0 0
        %1004 = vmatprep.subr.bf16.mxu0 0
        %1005 = vmatpush2.bf16.msra.mxu0 0
        %1006 = vmatprep.subr.bf16.mxu0 0
        %1007 = vmatpush2.bf16.msra.mxu0 0
        %1008 = vmatprep.subr.bf16.mxu0 0
        %1009 = vmatpush2.bf16.msra.mxu0 0
        %1010 = vmatprep.subr.bf16.mxu0 0
        %1011 = vmatpush2.bf16.msra.mxu0 0
        %1012 = vmatprep.mubr.bf16.mxu0 0
        %1013 = vmatmul.mubr.bf16.gmra.mxu0 %v972
        %v1014 = vpop.f32.mrf.mxu0
        %v1015 = vadd.f32 0.0, %v1014
        %v1016 = vpop.f32.mrf.mxu0
        %v1017 = vpop.f32.mrf.mxu0
        %v1018 = vadd.f32 0.0, %v1017
        %v1019 = vpop.f32.mrf.mxu0
        %1020 = vmatprep.mubr.bf16.mxu0 0
        %1021 = vmatmul.mubr.bf16.gmra.mxu0 %v975
        %v1022 = vpop.f32.mrf.mxu0
        %v1023 = vadd.f32 0.0, %v1022
        %v1024 = vpop.f32.mrf.mxu0
        %v1025 = vpop.f32.mrf.mxu0
        %v1026 = vadd.f32 0.0, %v1025
        %v1027 = vpop.f32.mrf.mxu0
        %1028 = vdwg.mxu0
        %v1029 = vadd.f32 %v911, %v1015
        %v1030 = vadd.f32 %v912, %v1018
        %v1031 = vadd.f32 %v913, %v1023
        %v1032 = vadd.f32 %v914, %v1026
        %v1035 = vrot.slane %v835, 5
        %v1036 = vrot.slane %v1035, 4
        %v1037 = vrot.slane %v836, 5
        %v1038 = vsel %vm750, %v1036, %v1037
        %v1039 = vrot.slane %v1037, 4
        %v1040 = vrot.slane %v837, 5
        %v1041 = vsel %vm750, %v1039, %v1040
        %v1042 = vrot.slane %v838, 5
        %v1043 = vrot.slane %v1042, 4
        %v1044 = vrot.slane %v839, 5
        %v1045 = vsel %vm750, %v1043, %v1044
        %v1046 = vrot.slane %v1044, 4
        %v1047 = vrot.slane %v840, 5
        %v1048 = vsel %vm750, %v1046, %v1047
        %s1049 = scalar_lea.vmem %s536, 10
        %v1050 = vld [vmem:[%s1049] sm:$0x3]
        %v1051 = vunpack.c.l.b16 %v1038
        %v1052 = vunpack.c.l.b16 %v1041
        %v1053 = vunpack.c.l.b16 %v1045
        %v1054 = vunpack.c.l.b16 %v1048
        %v1055 = vpack.c.b16 %v1052, %v1051
        %v1056 = vpack.c.b16 %v1054, %v1053
        %v1058 = vsel %vm618, %v1055, 0
        %v1061 = vsel %vm618, %v1056, 0
        %v1064 = vsel %vm625, %v1050, 0
        %1066 = vmatprep.subr.bf16.mxu0 0
        %1067 = vmatpush1.bf16.msra.mxu0 0
        %1068 = vmatprep.subr.bf16.mxu0 0
        %1069 = vmatpush1.bf16.msra.mxu0 0
        %1070 = vmatprep.subr.bf16.mxu0 0
        %1071 = vmatpush1.bf16.msra.mxu0 0
        %1072 = vmatprep.subr.bf16.mxu0 0
        %1073 = vmatpush1.bf16.msra.mxu0 0
        %1074 = vmatprep.subr.bf16.mxu0 0
        %1075 = vmatpush1.bf16.msra.mxu0 0
        %1076 = vmatprep.subr.bf16.mxu0 0
        %1077 = vmatpush1.bf16.msra.mxu0 0
        %1078 = vmatprep.subr.bf16.mxu0 0
        %1079 = vmatpush1.bf16.msra.mxu0 0
        %1080 = vmatprep.subr.bf16.mxu0 0
        %1081 = vmatpush1.bf16.msra.mxu0 %v1064
        %1082 = vmatprep.subr.bf16.mxu0 0
        %1083 = vmatpush2.bf16.msra.mxu0 0
        %1084 = vmatprep.subr.bf16.mxu0 0
        %1085 = vmatpush2.bf16.msra.mxu0 0
        %1086 = vmatprep.subr.bf16.mxu0 0
        %1087 = vmatpush2.bf16.msra.mxu0 0
        %1088 = vmatprep.subr.bf16.mxu0 0
        %1089 = vmatpush2.bf16.msra.mxu0 0
        %1090 = vmatprep.subr.bf16.mxu0 0
        %1091 = vmatpush2.bf16.msra.mxu0 0
        %1092 = vmatprep.subr.bf16.mxu0 0
        %1093 = vmatpush2.bf16.msra.mxu0 0
        %1094 = vmatprep.subr.bf16.mxu0 0
        %1095 = vmatpush2.bf16.msra.mxu0 0
        %1096 = vmatprep.subr.bf16.mxu0 0
        %1097 = vmatpush2.bf16.msra.mxu0 0
        %1098 = vmatprep.mubr.bf16.mxu0 0
        %1099 = vmatmul.mubr.bf16.gmra.mxu0 %v1058
        %v1100 = vpop.f32.mrf.mxu0
        %v1101 = vadd.f32 0.0, %v1100
        %v1102 = vpop.f32.mrf.mxu0
        %v1103 = vpop.f32.mrf.mxu0
        %v1104 = vadd.f32 0.0, %v1103
        %v1105 = vpop.f32.mrf.mxu0
        %1106 = vmatprep.mubr.bf16.mxu0 0
        %1107 = vmatmul.mubr.bf16.gmra.mxu0 %v1061
        %v1108 = vpop.f32.mrf.mxu0
        %v1109 = vadd.f32 0.0, %v1108
        %v1110 = vpop.f32.mrf.mxu0
        %v1111 = vpop.f32.mrf.mxu0
        %v1112 = vadd.f32 0.0, %v1111
        %v1113 = vpop.f32.mrf.mxu0
        %1114 = vdwg.mxu0
        %v1115 = vadd.f32 %v1029, %v1101
        %v1116 = vadd.f32 %v1030, %v1104
        %v1117 = vadd.f32 %v1031, %v1109
        %v1118 = vadd.f32 %v1032, %v1112
        %v1119 = vld [vmem:[%s482] sm:$0xf]
        %v1120 = vld [vmem:[%s482 + $0x4] sm:$0xf]
        %v1121 = vld [vmem:[%s482 + $0x8] sm:$0x1]
        %v1122 = vld [vmem:[%s482 + $0xc] sm:$0xf]
        %v1123 = vld [vmem:[%s482 + $0x10] sm:$0xf]
        %v1124 = vld [vmem:[%s482 + $0x14] sm:$0x1]
        %s1125 = scalar_lea.vmem %s536, 12
        %v1126 = vld [vmem:[%s1125] sm:$0x3]
        %v1131 = vunpack.c.l.b16 %v1119
        %v1132 = vunpack.c.l.b16 %v1120
        %v1133 = vunpack.c.l.b16 %v1122
        %v1134 = vunpack.c.l.b16 %v1123
        %v1135 = vpack.c.b16 %v1132, %v1131
        %v1136 = vpack.c.b16 %v1134, %v1133
        %v1138 = vsel %vm618, %v1135, 0
        %v1141 = vsel %vm618, %v1136, 0
        %v1144 = vsel %vm625, %v1126, 0
        %1146 = vmatprep.subr.bf16.mxu0 0
        %1147 = vmatpush1.bf16.msra.mxu0 0
        %1148 = vmatprep.subr.bf16.mxu0 0
        %1149 = vmatpush1.bf16.msra.mxu0 0
        %1150 = vmatprep.subr.bf16.mxu0 0
        %1151 = vmatpush1.bf16.msra.mxu0 0
        %1152 = vmatprep.subr.bf16.mxu0 0
        %1153 = vmatpush1.bf16.msra.mxu0 0
        %1154 = vmatprep.subr.bf16.mxu0 0
        %1155 = vmatpush1.bf16.msra.mxu0 0
        %1156 = vmatprep.subr.bf16.mxu0 0
        %1157 = vmatpush1.bf16.msra.mxu0 0
        %1158 = vmatprep.subr.bf16.mxu0 0
        %1159 = vmatpush1.bf16.msra.mxu0 0
        %1160 = vmatprep.subr.bf16.mxu0 0
        %1161 = vmatpush1.bf16.msra.mxu0 %v1144
        %1162 = vmatprep.subr.bf16.mxu0 0
        %1163 = vmatpush2.bf16.msra.mxu0 0
        %1164 = vmatprep.subr.bf16.mxu0 0
        %1165 = vmatpush2.bf16.msra.mxu0 0
        %1166 = vmatprep.subr.bf16.mxu0 0
        %1167 = vmatpush2.bf16.msra.mxu0 0
        %1168 = vmatprep.subr.bf16.mxu0 0
        %1169 = vmatpush2.bf16.msra.mxu0 0
        %1170 = vmatprep.subr.bf16.mxu0 0
        %1171 = vmatpush2.bf16.msra.mxu0 0
        %1172 = vmatprep.subr.bf16.mxu0 0
        %1173 = vmatpush2.bf16.msra.mxu0 0
        %1174 = vmatprep.subr.bf16.mxu0 0
        %1175 = vmatpush2.bf16.msra.mxu0 0
        %1176 = vmatprep.subr.bf16.mxu0 0
        %1177 = vmatpush2.bf16.msra.mxu0 0
        %1178 = vmatprep.mubr.bf16.mxu0 0
        %1179 = vmatmul.mubr.bf16.gmra.mxu0 %v1138
        %v1180 = vpop.f32.mrf.mxu0
        %v1181 = vadd.f32 0.0, %v1180
        %v1182 = vpop.f32.mrf.mxu0
        %v1183 = vpop.f32.mrf.mxu0
        %v1184 = vadd.f32 0.0, %v1183
        %v1185 = vpop.f32.mrf.mxu0
        %1186 = vmatprep.mubr.bf16.mxu0 0
        %1187 = vmatmul.mubr.bf16.gmra.mxu0 %v1141
        %v1188 = vpop.f32.mrf.mxu0
        %v1189 = vadd.f32 0.0, %v1188
        %v1190 = vpop.f32.mrf.mxu0
        %v1191 = vpop.f32.mrf.mxu0
        %v1192 = vadd.f32 0.0, %v1191
        %v1193 = vpop.f32.mrf.mxu0
        %1194 = vdwg.mxu0
        %v1195 = vadd.f32 %v1115, %v1181
        %v1196 = vadd.f32 %v1116, %v1184
        %v1197 = vadd.f32 %v1117, %v1189
        %v1198 = vadd.f32 %v1118, %v1192
        %v1200 = vshrl.u32 %v1119, 16
        %v1202 = vrot.slane %v1200, 4
        %v1203 = vshll.u32 %v1119, 16
        %v1205 = vrot.slane %v1203, 5
        %v1206 = vor.u32 %v1202, %v1205
        %v1207 = vrot.slane %v1206, 4
        %v1209 = vshll.u32 %v1120, 16
        %v1211 = vrot.slane %v1209, 5
        %v1212 = vsel %vm561, %v1207, %v1211
        %v1213 = vshrl.u32 %v1120, 16
        %v1215 = vrot.slane %v1213, 4
        %v1216 = vor.u32 %v1215, %v1211
        %v1217 = vrot.slane %v1216, 4
        %v1219 = vshll.u32 %v1121, 16
        %v1221 = vrot.slane %v1219, 5
        %v1222 = vsel %vm561, %v1217, %v1221
        %v1224 = vshrl.u32 %v1122, 16
        %v1226 = vrot.slane %v1224, 4
        %v1227 = vshll.u32 %v1122, 16
        %v1229 = vrot.slane %v1227, 5
        %v1230 = vor.u32 %v1226, %v1229
        %v1231 = vrot.slane %v1230, 4
        %v1233 = vshll.u32 %v1123, 16
        %v1235 = vrot.slane %v1233, 5
        %v1236 = vsel %vm561, %v1231, %v1235
        %v1237 = vshrl.u32 %v1123, 16
        %v1239 = vrot.slane %v1237, 4
        %v1240 = vor.u32 %v1239, %v1235
        %v1241 = vrot.slane %v1240, 4
        %v1243 = vshll.u32 %v1124, 16
        %v1245 = vrot.slane %v1243, 5
        %v1246 = vsel %vm561, %v1241, %v1245
        %s1247 = scalar_lea.vmem %s536, 14
        %v1248 = vld [vmem:[%s1247] sm:$0x3]
        %v1249 = vunpack.c.l.b16 %v1212
        %v1250 = vunpack.c.l.b16 %v1222
        %v1251 = vunpack.c.l.b16 %v1236
        %v1252 = vunpack.c.l.b16 %v1246
        %v1253 = vpack.c.b16 %v1250, %v1249
        %v1254 = vpack.c.b16 %v1252, %v1251
        %v1256 = vsel %vm618, %v1253, 0
        %v1259 = vsel %vm618, %v1254, 0
        %v1262 = vsel %vm625, %v1248, 0
        %1264 = vmatprep.subr.bf16.mxu0 0
        %1265 = vmatpush1.bf16.msra.mxu0 0
        %1266 = vmatprep.subr.bf16.mxu0 0
        %1267 = vmatpush1.bf16.msra.mxu0 0
        %1268 = vmatprep.subr.bf16.mxu0 0
        %1269 = vmatpush1.bf16.msra.mxu0 0
        %1270 = vmatprep.subr.bf16.mxu0 0
        %1271 = vmatpush1.bf16.msra.mxu0 0
        %1272 = vmatprep.subr.bf16.mxu0 0
        %1273 = vmatpush1.bf16.msra.mxu0 0
        %1274 = vmatprep.subr.bf16.mxu0 0
        %1275 = vmatpush1.bf16.msra.mxu0 0
        %1276 = vmatprep.subr.bf16.mxu0 0
        %1277 = vmatpush1.bf16.msra.mxu0 0
        %1278 = vmatprep.subr.bf16.mxu0 0
        %1279 = vmatpush1.bf16.msra.mxu0 %v1262
        %1280 = vmatprep.subr.bf16.mxu0 0
        %1281 = vmatpush2.bf16.msra.mxu0 0
        %1282 = vmatprep.subr.bf16.mxu0 0
        %1283 = vmatpush2.bf16.msra.mxu0 0
        %1284 = vmatprep.subr.bf16.mxu0 0
        %1285 = vmatpush2.bf16.msra.mxu0 0
        %1286 = vmatprep.subr.bf16.mxu0 0
        %1287 = vmatpush2.bf16.msra.mxu0 0
        %1288 = vmatprep.subr.bf16.mxu0 0
        %1289 = vmatpush2.bf16.msra.mxu0 0
        %1290 = vmatprep.subr.bf16.mxu0 0
        %1291 = vmatpush2.bf16.msra.mxu0 0
        %1292 = vmatprep.subr.bf16.mxu0 0
        %1293 = vmatpush2.bf16.msra.mxu0 0
        %1294 = vmatprep.subr.bf16.mxu0 0
        %1295 = vmatpush2.bf16.msra.mxu0 0
        %1296 = vmatprep.mubr.bf16.mxu0 0
        %1297 = vmatmul.mubr.bf16.gmra.mxu0 %v1256
        %v1298 = vpop.f32.mrf.mxu0
        %v1299 = vadd.f32 0.0, %v1298
        %v1300 = vpop.f32.mrf.mxu0
        %v1301 = vpop.f32.mrf.mxu0
        %v1302 = vadd.f32 0.0, %v1301
        %v1303 = vpop.f32.mrf.mxu0
        %1304 = vmatprep.mubr.bf16.mxu0 0
        %1305 = vmatmul.mubr.bf16.gmra.mxu0 %v1259
        %v1306 = vpop.f32.mrf.mxu0
        %v1307 = vadd.f32 0.0, %v1306
        %v1308 = vpop.f32.mrf.mxu0
        %v1309 = vpop.f32.mrf.mxu0
        %v1310 = vadd.f32 0.0, %v1309
        %v1311 = vpop.f32.mrf.mxu0
        %1312 = vdwg.mxu0
        %v1313 = vadd.f32 %v1195, %v1299
        %v1314 = vadd.f32 %v1196, %v1302
        %v1315 = vadd.f32 %v1197, %v1307
        %v1316 = vadd.f32 %v1198, %v1310
        %v1319 = vrot.slane %v1119, 5
        %v1320 = vrot.slane %v1319, 4
        %v1321 = vrot.slane %v1120, 5
        %v1322 = vsel %vm750, %v1320, %v1321
        %v1323 = vrot.slane %v1321, 4
        %v1324 = vrot.slane %v1121, 5
        %v1325 = vsel %vm750, %v1323, %v1324
        %v1326 = vrot.slane %v1122, 5
        %v1327 = vrot.slane %v1326, 4
        %v1328 = vrot.slane %v1123, 5
        %v1329 = vsel %vm750, %v1327, %v1328
        %v1330 = vrot.slane %v1328, 4
        %v1331 = vrot.slane %v1124, 5
        %v1332 = vsel %vm750, %v1330, %v1331
        %s1333 = scalar_lea.vmem %s536, 16
        %v1334 = vld [vmem:[%s1333] sm:$0x3]
        %v1335 = vunpack.c.l.b16 %v1322
        %v1336 = vunpack.c.l.b16 %v1325
        %v1337 = vunpack.c.l.b16 %v1329
        %v1338 = vunpack.c.l.b16 %v1332
        %v1339 = vpack.c.b16 %v1336, %v1335
        %v1340 = vpack.c.b16 %v1338, %v1337
        %v1342 = vsel %vm618, %v1339, 0
        %v1345 = vsel %vm618, %v1340, 0
        %v1348 = vsel %vm625, %v1334, 0
        %1350 = vmatprep.subr.bf16.mxu0 0
        %1351 = vmatpush1.bf16.msra.mxu0 0
        %1352 = vmatprep.subr.bf16.mxu0 0
        %1353 = vmatpush1.bf16.msra.mxu0 0
        %1354 = vmatprep.subr.bf16.mxu0 0
        %1355 = vmatpush1.bf16.msra.mxu0 0
        %1356 = vmatprep.subr.bf16.mxu0 0
        %1357 = vmatpush1.bf16.msra.mxu0 0
        %1358 = vmatprep.subr.bf16.mxu0 0
        %1359 = vmatpush1.bf16.msra.mxu0 0
        %1360 = vmatprep.subr.bf16.mxu0 0
        %1361 = vmatpush1.bf16.msra.mxu0 0
        %1362 = vmatprep.subr.bf16.mxu0 0
        %1363 = vmatpush1.bf16.msra.mxu0 0
        %1364 = vmatprep.subr.bf16.mxu0 0
        %1365 = vmatpush1.bf16.msra.mxu0 %v1348
        %1366 = vmatprep.subr.bf16.mxu0 0
        %1367 = vmatpush2.bf16.msra.mxu0 0
        %1368 = vmatprep.subr.bf16.mxu0 0
        %1369 = vmatpush2.bf16.msra.mxu0 0
        %1370 = vmatprep.subr.bf16.mxu0 0
        %1371 = vmatpush2.bf16.msra.mxu0 0
        %1372 = vmatprep.subr.bf16.mxu0 0
        %1373 = vmatpush2.bf16.msra.mxu0 0
        %1374 = vmatprep.subr.bf16.mxu0 0
        %1375 = vmatpush2.bf16.msra.mxu0 0
        %1376 = vmatprep.subr.bf16.mxu0 0
        %1377 = vmatpush2.bf16.msra.mxu0 0
        %1378 = vmatprep.subr.bf16.mxu0 0
        %1379 = vmatpush2.bf16.msra.mxu0 0
        %1380 = vmatprep.subr.bf16.mxu0 0
        %1381 = vmatpush2.bf16.msra.mxu0 0
        %1382 = vmatprep.mubr.bf16.mxu0 0
        %1383 = vmatmul.mubr.bf16.gmra.mxu0 %v1342
        %v1384 = vpop.f32.mrf.mxu0
        %v1385 = vadd.f32 0.0, %v1384
        %v1386 = vpop.f32.mrf.mxu0
        %v1387 = vpop.f32.mrf.mxu0
        %v1388 = vadd.f32 0.0, %v1387
        %v1389 = vpop.f32.mrf.mxu0
        %1390 = vmatprep.mubr.bf16.mxu0 0
        %1391 = vmatmul.mubr.bf16.gmra.mxu0 %v1345
        %v1392 = vpop.f32.mrf.mxu0
        %v1393 = vadd.f32 0.0, %v1392
        %v1394 = vpop.f32.mrf.mxu0
        %v1395 = vpop.f32.mrf.mxu0
        %v1396 = vadd.f32 0.0, %v1395
        %v1397 = vpop.f32.mrf.mxu0
        %1398 = vdwg.mxu0
        %v1399 = vadd.f32 %v1313, %v1385
        %v1400 = vadd.f32 %v1314, %v1388
        %v1401 = vadd.f32 %v1315, %v1393
        %v1402 = vadd.f32 %v1316, %v1396
        %1403 = vst [vmem:[%s515] sm:$0xff] %v1399
        %1404 = vst [vmem:[%s515 + $0x8] sm:$0xff] %v1400
        %1405 = vst [vmem:[%s515 + $0x10] sm:$0xff] %v1401
        %1406 = vst [vmem:[%s515 + $0x18] sm:$0xff] %v1402
        %v1407 = vld [vmem:[#allocation2] sm:$0x3]
        %v1408 = vadd.f32 %v1399, %v1400
        %v1409 = vadd.f32 %v1408, %v1401
        %v1410 = vadd.f32 %v1409, %v1402
        %v1411 = vrot.slane %v1410, 4
        %v1412 = vadd.f32 %v1410, %v1411
        %v1413 = vrot.slane %v1412, 2
        %v1414 = vadd.f32 %v1412, %v1413
        %v1415 = vrot.slane %v1414, 1
        %v1416 = vadd.f32 %v1414, %v1415
        %v1417 = vmul.f32 %v1399, %v1399
        %v1418 = vmul.f32 %v1400, %v1400
        %v1419 = vmul.f32 %v1401, %v1401
        %v1420 = vmul.f32 %v1402, %v1402
        %v1421 = vadd.f32 %v1417, %v1418
        %v1422 = vadd.f32 %v1421, %v1419
        %v1423 = vadd.f32 %v1422, %v1420
        %v1424 = vrot.slane %v1423, 4
        %v1425 = vadd.f32 %v1423, %v1424
        %v1426 = vrot.slane %v1425, 2
        %v1427 = vadd.f32 %v1425, %v1426
        %v1428 = vrot.slane %v1427, 1
        %v1429 = vadd.f32 %v1427, %v1428
        %vm1430 = vcmask 1040384
        %v1431 = vsel %vm1430, %v1416, %v1429
        %v1432 = vadd.f32 %v1407, %v1431
        %1433 = vst [vmem:[#allocation2] sm:$0x3] %v1432
        %p1434 = scmp.eq.s32.totalorder %s24, 7
        // Predicated region
        $region164: #{conv_block_forward.2} parent=146 // pred_check
          %p1435 = pneg %p1434
        $region165: #{conv_block_forward.2} parent=146 // pred_check_branch
          %1437 = sbr.rel (%p1435) target = $region167
        $region166: #{conv_block_forward.2} parent=146 // pred_region
          %v1438 = vld [vmem:[#allocation2] sm:$0x3]
          %1439 = vst [vmem:[%s545] sm:$0x3] %v1438
        $region167: #{conv_block_forward.2} parent=146 // pred_fallthru
          _
        %s1440 = sand.u32 %s170, 1
        %s1441 = sand.u32 %s170, 1
        %s1442 = smul.addr %s1441, 32
        %s1443 = scalar_lea.vmem [#allocation6], %s1442
        %p1444 = scmp.lt.s32.totalorder %s22, 1
        %s1445 = scalar_select %p1444, %s22, 1
        %p1446 = scmp.lt.s32.totalorder %s23, 0
        %s1447 = scalar_select %p1446, %s23, 0
        %s1448 = sadd.s32 %s1447, %s1445
        %s1449 = smul.addr %s1448, 2
        %s1450 = scalar_lea.vmem %s5, %s1449
        // Predicated region
        $region168: #{conv_block_forward.2} parent=146 // pred_check
          %p1451 = pneg %p180
        $region169: #{conv_block_forward.2} parent=146 // pred_check_branch
          %1453 = sbr.rel (%p1451) target = $region171
        $region170: #{conv_block_forward.2} parent=146 // pred_region
          %s1454 = smul.u32 %s22, 8
          %s1455 = sadd.s32 %s1454, %s24
          %s1456 = smul.addr %s1455, 2
          %s1457 = sadd.s32 %s23, %s1456
          %s1458 = smul.addr %s1457, 8
          %s1459 = scalar_lea.vmem %s4, %s1458
          // Predicated region
          $region172: #{conv_block_forward.2} parent=170 // pred_check
            _
          $region173: #{conv_block_forward.2} parent=170 // pred_check_branch
            %1461 = sbr.rel (0) target = $region175
          $region174: #{conv_block_forward.2} parent=170 // pred_region
            // Predicated region
            $region176: #{conv_block_forward.2} parent=174 // pred_check
              _
            $region177: #{conv_block_forward.2} parent=174 // pred_check_branch
              %1463 = sbr.rel (0) target = $region179
            $region178: #{conv_block_forward.2} parent=174 // pred_region
              // Predicated region
              $region191: #{conv_block_forward.2} parent=178 // pred_check
                _
              $region192: #{conv_block_forward.2} parent=178 // pred_check_branch
                %1485 = sbr.rel (0) target = $region194
              $region193: #{conv_block_forward.2} parent=178 // pred_region
                loop: start=0, step=1, limit=1
                $region195: #{conv_block_forward.2} parent=193 // loop_pre_header
                  _
                $region196: #{conv_block_forward.2} parent=193 // loop_header
                  %s1487 = sphi 0, %s1491
                  %p1488 = scmp.ge.s32.totalorder %s1487, 1
                  %s1492 = sphi %s1443, %s1443
                  %s1493 = sphi %s1459, %s1459
                $region197: #{conv_block_forward.2} parent=193 // loop_header_branch
                  %1490 = sbr.rel (%p1488) target = $region201
                $region198: #{conv_block_forward.2} parent=193 // loop_body
                  %v1494 = vld [vmem:[%s1492] sm:$0xff]
                  %1495 = vst [vmem:[%s1493] sm:$0xff] %v1494
                  %v1496 = vld [vmem:[%s1492 + $0x8] sm:$0xff]
                  %1497 = vst [vmem:[%s1493 + $0x8] sm:$0xff] %v1496
                  %v1498 = vld [vmem:[%s1492 + $0x10] sm:$0xff]
                  %1499 = vst [vmem:[%s1493 + $0x100] sm:$0xff] %v1498
                  %v1500 = vld [vmem:[%s1492 + $0x18] sm:$0xff]
                  %1501 = vst [vmem:[%s1493 + $0x108] sm:$0xff] %v1500
                $region199: #{conv_block_forward.2} parent=193 // loop_footer
                  %s1491 = sadd.s32 1, %s1487
                $region200: #{conv_block_forward.2} parent=193 // loop_footer_branch
                  %1486 = sbr.rel target = $region196
                $region201: #{conv_block_forward.2} parent=193 // loop_exit
                  _
              $region194: #{conv_block_forward.2} parent=178 // pred_fallthru
                _
              // Predicated region
              $region202: #{conv_block_forward.2} parent=178 // pred_check
                _
              $region203: #{conv_block_forward.2} parent=178 // pred_check_branch
                %1503 = sbr.rel target = $region205
              $region204: #{conv_block_forward.2} parent=178 // pred_region
                _
              $region205: #{conv_block_forward.2} parent=178 // pred_fallthru
                _
            $region179: #{conv_block_forward.2} parent=174 // pred_fallthru
              _
            // Predicated region
            $region180: #{conv_block_forward.2} parent=174 // pred_check
              _
            $region181: #{conv_block_forward.2} parent=174 // pred_check_branch
              %1465 = sbr.rel target = $region183
            $region182: #{conv_block_forward.2} parent=174 // pred_region
              %s1467 = ssub.s32 256, 1
              loop: start=0, step=1, limit=1
              $region184: #{conv_block_forward.2} parent=182 // loop_pre_header
                _
              $region185: #{conv_block_forward.2} parent=182 // loop_header
                %s1469 = sphi 0, %s1473
                %p1470 = scmp.ge.s32.totalorder %s1469, 1
                %s1474 = sphi %s1443, %s1443
                %s1475 = sphi %s1459, %s1459
              $region186: #{conv_block_forward.2} parent=182 // loop_header_branch
                %1472 = sbr.rel (%p1470) target = $region190
              $region187: #{conv_block_forward.2} parent=182 // loop_body
                %v1476 = vld [vmem:[%s1474] sm:%s1467]
                %1477 = vst [vmem:[%s1475] sm:%s1467] %v1476
                %v1478 = vld [vmem:[%s1474 + $0x8] sm:%s1467]
                %1479 = vst [vmem:[%s1475 + $0x8] sm:%s1467] %v1478
                %v1480 = vld [vmem:[%s1474 + $0x10] sm:%s1467]
                %1481 = vst [vmem:[%s1475 + $0x100] sm:%s1467] %v1480
                %v1482 = vld [vmem:[%s1474 + $0x18] sm:%s1467]
                %1483 = vst [vmem:[%s1475 + $0x108] sm:%s1467] %v1482
              $region188: #{conv_block_forward.2} parent=182 // loop_footer
                %s1473 = sadd.s32 1, %s1469
              $region189: #{conv_block_forward.2} parent=182 // loop_footer_branch
                %1468 = sbr.rel target = $region185
              $region190: #{conv_block_forward.2} parent=182 // loop_exit
                _
            $region183: #{conv_block_forward.2} parent=174 // pred_fallthru
              _
          $region175: #{conv_block_forward.2} parent=170 // pred_fallthru
            _
          %1504 = vnop
        $region171: #{conv_block_forward.2} parent=146 // pred_fallthru
          _
        // Predicated region
        $region206: #{conv_block_forward.2} parent=146 // pred_check
          %p1505 = pneg %p208
        $region207: #{conv_block_forward.2} parent=146 // pred_check_branch
          %1507 = sbr.rel (%p1505) target = $region209
        $region208: #{conv_block_forward.2} parent=146 // pred_region
          _
        $region209: #{conv_block_forward.2} parent=146 // pred_fallthru
          _
      $region147: #{conv_block_forward.2} parent=5 // pred_fallthru
        _
      %p1508 = scmp.le.s32.totalorder 2, %s12
      // Predicated region
      $region210: #{conv_block_forward.2} parent=5 // pred_check
        %p1509 = pneg %p1508
      $region211: #{conv_block_forward.2} parent=5 // pred_check_branch
        %1511 = sbr.rel (%p1509) target = $region213
      $region212: #{conv_block_forward.2} parent=5 // pred_region
        %s1512 = ssub.s32 %s12, 2
        // Predicated region
        $region214: #{conv_block_forward.2} parent=212 // pred_check
          %p1513 = pneg %p186
        $region215: #{conv_block_forward.2} parent=212 // pred_check_branch
          %1515 = sbr.rel (%p1513) target = $region217
        $region216: #{conv_block_forward.2} parent=212 // pred_region
          %s1516 = sand.u32 %s171, 1
          %s1517 = sand.u32 %s171, 1
          %s1518 = smul.addr %s1517, 32
          %s1519 = scalar_lea.vmem [#allocation6], %s1518
        $region217: #{conv_block_forward.2} parent=212 // pred_fallthru
          _
        // Predicated region
        $region218: #{conv_block_forward.2} parent=212 // pred_check
          %p1520 = pneg %p214
        $region219: #{conv_block_forward.2} parent=212 // pred_check_branch
          %1522 = sbr.rel (%p1520) target = $region221
        $region220: #{conv_block_forward.2} parent=212 // pred_region
          %p1523 = scmp.lt.s32.totalorder %s25, 1
          %s1524 = scalar_select %p1523, %s25, 1
          %p1525 = scmp.lt.s32.totalorder %s26, 0
          %s1526 = scalar_select %p1525, %s26, 0
          %s1527 = sadd.s32 %s1526, %s1524
          %s1528 = smul.addr %s1527, 2
          %s1529 = scalar_lea.vmem %s5, %s1528
        $region221: #{conv_block_forward.2} parent=212 // pred_fallthru
          _
      $region213: #{conv_block_forward.2} parent=5 // pred_fallthru
        _
    $region6: #{conv_block_forward.2} parent=1 // loop_footer
      %s16 = sadd.s32 1, %s12
    $region7: #{conv_block_forward.2} parent=1 // loop_footer_branch
      %11 = sbr.rel target = $region3
    $region8: #{conv_block_forward.2} parent=1 // loop_exit
      _

</llo_original>
